<compile_context>
chip_gen: v7x
topology: tpu7x:2x2x1
jax: 0.10.0
libtpu: 0.0.40
codegen_flags: <defaults>
</compile_context>

<pallas_src>
import math
import functools

import jax
import jax.numpy as jnp
from jax.experimental import pallas as pl
from jax.experimental.pallas import tpu as pltpu


def _subsample4_kernel(xq_ref, m_ref, b1_ref, w2_ref, b2_ref, wl_ref, bl_ref,
                       pos_ref, o_ref, taps_ref, h2s_ref, *, TT2, Fin, F2, C):
    cdt = taps_ref.dtype
    t2_0 = pl.program_id(1) * TT2
    if TT2 % 8 == 0:
        t2_0 = pl.multiple_of(t2_0, 8)

    # ---- conv1: 1 -> C channels, 3x3, stride 2, + bias + ReLU ------------------
    # xq rows pack 4 consecutive input frames; row r = frames [4r .. 4r+3].
    # even t1 = 2*(t2_0+k): taps are frames 4r, 4r+1, 4r+2      (row k, cols 0:3Fin)
    # odd  t1 = 2*(t2_0+k)+1: taps are frames 4r+2, 4r+3, 4r+4  (row k cols 2Fin:, row k+1 cols :Fin)
    xw = xq_ref[0, pl.ds(t2_0, TT2 + 1), :]                      # (TT2+1, 4*Fin)
    xe = xw[:, :3 * Fin]                                          # (TT2+1, 3*Fin)
    xo = jnp.concatenate([xw[:TT2, 2 * Fin:], xw[1:TT2 + 1, :Fin]], axis=1)
    mE = m_ref[...]                                               # (3*Fin, NC)
    b1 = b1_ref[...]                                              # (1, NC) f32
    he = jnp.maximum(jnp.dot(xe, mE, preferred_element_type=jnp.float32) + b1,
                     0.0).astype(cdt)                             # (TT2+1, NC)
    ho = jnp.maximum(jnp.dot(xo, mE, preferred_element_type=jnp.float32) + b1,
                     0.0).astype(cdt)                             # (TT2,   NC)

    # Conv2 time taps; the +1 row shift (dt=2) is materialized once here so every
    # per-f2 read below is an 8-aligned sublane slice.
    taps_ref[0] = he[:TT2]          # h1[2*t2]
    taps_ref[1] = ho                # h1[2*t2 + 1]
    taps_ref[2] = he[1:TT2 + 1]     # h1[2*t2 + 2]

    # ---- conv2 (C -> C, 3x3, stride 2) + ReLU, staged into (TT2, F2*C) ---------
    b2b = jnp.broadcast_to(b2_ref[...], (TT2, C))                 # hoisted broadcast
    for f2 in range(F2):                                          # static: F2 <= ~32
        c0 = 2 * f2 * C
        acc = jnp.dot(taps_ref[0, :, c0:c0 + 3 * C], w2_ref[0],
                      preferred_element_type=jnp.float32)
        acc = acc + jnp.dot(taps_ref[1, :, c0:c0 + 3 * C], w2_ref[1],
                            preferred_element_type=jnp.float32)
        acc = acc + jnp.dot(taps_ref[2, :, c0:c0 + 3 * C], w2_ref[2],
                            preferred_element_type=jnp.float32)
        h2s_ref[:, f2 * C:(f2 + 1) * C] = jnp.maximum(acc + b2b, 0.0).astype(cdt)

    # ---- Linear (C*F2 -> D), sqrt(D) pre-folded, + positional encoding ---------
    y = jnp.dot(h2s_ref[...], wl_ref[...], preferred_element_type=jnp.float32)
    y = y + bl_ref[...] + pos_ref[0]
    o_ref[0] = y.astype(o_ref.dtype)


def conv2d_subsampling4(x, x_mask, w1, b1, w2, b2, wl, bl, pos_table, offset=0,
                        compute_dtype=jnp.bfloat16, tile_t2=None):
    """x: (B, T, Fin), x_mask: (B, 1, T). Returns (y, pos_emb, subsampled_mask)."""
    B, T, Fin = x.shape
    C = w1.shape[0]                      # conv channels == output_dim
    D = wl.shape[0]                      # == output_dim
    T1 = (T - 3) // 2 + 1
    F1 = (Fin - 3) // 2 + 1
    T2 = (T1 - 3) // 2 + 1
    F2 = (F1 - 3) // 2 + 1
    assert T2 >= 1 and F2 >= 1, "input too short/narrow for 4x subsampling"
    assert offset + T2 <= pos_table.shape[1], "pos_table too short for offset + T'"

    NBLK = 2 * F2 + 1                    # conv1 output frequencies consumed by conv2
    NC = NBLK * C
    cdt = jnp.dtype(compute_dtype)
    out_dtype = x.dtype
    xscale = math.sqrt(float(D))

    # ---- time tiling ------------------------------------------------------------
    if tile_t2 is None:
        TT2 = T2 if T2 <= 64 else 64
    else:
        TT2 = min(int(tile_t2), T2)
    NT = -(-T2 // TT2)
    if NT > 1:
        assert TT2 % 8 == 0, "tile_t2 must be a multiple of 8 when tiling is active"
    T2_pad = NT * TT2
    T_pad = 4 * T2_pad + 4               # covers max needed frame 4*T2_pad+2; /4 divisible

    if T_pad >= T:
        xp = jnp.pad(x, ((0, 0), (0, T_pad - T), (0, 0)))
    else:
        xp = x[:, :T_pad]                # frames beyond 4*T2+2 are never used
    # Pack 4 consecutive frames per row so conv1 taps become static lane slices.
    xq = xp.astype(cdt).reshape(B, T_pad // 4, 4 * Fin)

    # ---- conv1 weights packed over (f1, c) columns: mE (3*Fin, NBLK*C) ----------
    w1r = jnp.transpose(w1[:, 0], (1, 2, 0))                             # (dt, df, c)
    f1_of = jnp.arange(NBLK)
    df_idx = jnp.arange(Fin)[:, None] - 2 * f1_of[None, :]               # (Fin, NBLK)
    valid = (df_idx >= 0) & (df_idx <= 2)
    M4 = w1r[:, jnp.clip(df_idx, 0, 2), :]                               # (3, Fin, NBLK, C)
    M4 = jnp.where(valid[None, :, :, None], M4, 0.0)
    mE = M4.reshape(3 * Fin, NC).astype(cdt)

    b1e = jnp.tile(b1, NBLK)[None, :].astype(jnp.float32)                # (1, NC)
    # conv2 weights grouped per time tap with K = 3*C (merged frequency taps).
    w2g = jnp.transpose(w2, (2, 3, 1, 0)).reshape(3, 3 * C, C).astype(cdt)
    b2e = b2[None, :].astype(jnp.float32)                                # (1, C)
    # Linear weight as one (F2*C, D) matrix (row index = f2*C + c), sqrt(D) folded in.
    wlf = (jnp.transpose(wl.reshape(D, C, F2), (2, 1, 0)) * xscale
           ).reshape(F2 * C, D).astype(cdt)
    blp = (bl * xscale)[None, :].astype(jnp.float32)                     # (1, D)

    pos_emb = pos_table[:, offset:offset + T2, :]
    pos_pad = jnp.pad(pos_emb.astype(jnp.float32),
                      ((0, 0), (0, T2_pad - T2), (0, 0)))

    kernel = functools.partial(_subsample4_kernel, TT2=TT2, Fin=Fin, F2=F2, C=C)

    def _nb(shape, dt):
        return int(math.prod(shape)) * jnp.dtype(dt).itemsize

    # ---- VMEM budget (blocks are double-buffered by the pipeline) ---------------
    in_block_bytes = (_nb((1, T2_pad + 1, 4 * Fin), cdt) + _nb((3 * Fin, NC), cdt)
                      + _nb((1, NC), jnp.float32) + _nb((3, 3 * C, C), cdt)
                      + _nb((1, C), jnp.float32) + _nb((F2 * C, D), cdt)
                      + _nb((1, D), jnp.float32) + _nb((1, TT2, D), jnp.float32))
    out_block_bytes = _nb((1, TT2, D), out_dtype)
    scratch_bytes = _nb((3, TT2, NC), cdt) + _nb((TT2, F2 * C), cdt)
    internal_bytes = (2 * TT2 + 2) * NC * 4 + 8 * TT2 * max(C, D) * 4
    need = 2 * (in_block_bytes + out_block_bytes) + scratch_bytes + internal_bytes
    vmem_limit = int(min(max(int(need * 1.5) + (8 << 20), 24 << 20), 56 << 20))

    flops = int(2 * B * ((2 * T2 + 1) * (3 * Fin) * NC
                         + T2 * F2 * 3 * (3 * C) * C
                         + T2 * (F2 * C) * D))
    bytes_accessed = int(B * _nb((T2_pad + 1, 4 * Fin), cdt)
                         + _nb((3 * Fin, NC), cdt) + _nb((3, 3 * C, C), cdt)
                         + _nb((F2 * C, D), cdt)
                         + B * _nb((T2_pad, D), out_dtype))

    y_pad = pl.pallas_call(
        kernel,
        out_shape=jax.ShapeDtypeStruct((B, T2_pad, D), out_dtype),
        grid_spec=pltpu.PrefetchScalarGridSpec(
            num_scalar_prefetch=0,
            grid=(B, NT),
            in_specs=[
                pl.BlockSpec((1, T2_pad + 1, 4 * Fin), lambda b, j: (b, 0, 0)),  # packed x (per-b resident)
                pl.BlockSpec((3 * Fin, NC), lambda b, j: (0, 0)),                # conv1 weights
                pl.BlockSpec((1, NC), lambda b, j: (0, 0)),                      # conv1 bias
                pl.BlockSpec((3, 3 * C, C), lambda b, j: (0, 0, 0)),             # conv2 weights (K=3C grouped)
                pl.BlockSpec((1, C), lambda b, j: (0, 0)),                       # conv2 bias
                pl.BlockSpec((F2 * C, D), lambda b, j: (0, 0)),                  # linear weight (pre-scaled)
                pl.BlockSpec((1, D), lambda b, j: (0, 0)),                       # linear bias (pre-scaled)
                pl.BlockSpec((1, TT2, D), lambda b, j: (0, j, 0)),               # pos_emb tile
            ],
            out_specs=pl.BlockSpec((1, TT2, D), lambda b, j: (b, j, 0)),
            scratch_shapes=[
                pltpu.VMEM((3, TT2, NC), cdt),        # conv2 time taps (dt=2 shift pre-applied)
                pltpu.VMEM((TT2, F2 * C), cdt),       # staged h2 for the single big Linear matmul
            ],
        ),
        compiler_params=pltpu.CompilerParams(
            dimension_semantics=("parallel", "parallel"),
            vmem_limit_bytes=vmem_limit,
        ),
        cost_estimate=pl.CostEstimate(flops=flops, transcendentals=0,
                                      bytes_accessed=bytes_accessed),
    )(xq, mE, b1e, w2g, b2e, wlf, blp, pos_pad)

    y = y_pad[:, :T2, :]
    mask = x_mask[:, :, :-2:2][:, :, :-2:2]
    return y, pos_emb, mask


def make_sinusoidal_table(d_model, max_len=5000, dtype=jnp.float32):
    """Standard wenet/transformer sinusoidal positional encoding table (1, max_len, d_model)."""
    position = jnp.arange(max_len, dtype=jnp.float32)[:, None]
    div_term = jnp.exp(
        jnp.arange(0, d_model, 2, dtype=jnp.float32) * (-math.log(10000.0) / d_model))
    pe = jnp.zeros((max_len, d_model), dtype=jnp.float32)
    pe = pe.at[:, 0::2].set(jnp.sin(position * div_term))
    pe = pe.at[:, 1::2].set(jnp.cos(position * div_term))
    return pe[None, :, :].astype(dtype)


def reference(x, x_mask, w1, b1, w2, b2, wl, bl, pos_table, offset=0):
    """Pure-JAX reference for correctness check."""
    hp = jax.lax.Precision.HIGHEST
    y = jax.lax.conv_general_dilated(
        x[:, None, :, :], w1, window_strides=(2, 2), padding="VALID",
        dimension_numbers=("NCHW", "OIHW", "NCHW"), precision=hp)
    y = jax.nn.relu(y + b1[None, :, None, None])
    y = jax.lax.conv_general_dilated(
        y, w2, window_strides=(2, 2), padding="VALID",
        dimension_numbers=("NCHW", "OIHW", "NCHW"), precision=hp)
    y = jax.nn.relu(y + b2[None, :, None, None])
    b, c, t2, f2 = y.shape
    y = jnp.transpose(y, (0, 2, 1, 3)).reshape(b, t2, c * f2)
    y = jnp.einsum("btk,dk->btd", y, wl, precision=hp) + bl
    d = wl.shape[0]
    pos = pos_table[:, offset:offset + t2, :]
    y = y * math.sqrt(float(d)) + pos
    mask = x_mask[:, :, :-2:2][:, :, :-2:2]
    return y, pos, mask


if __name__ == "__main__":
    key = jax.random.PRNGKey(0)
    B, T, Fin, C = 2, 16, 16, 32            # batch, time, fbank dim, output_dim

    T2 = ((T - 1) // 2 - 1) // 2
    F2 = ((Fin - 1) // 2 - 1) // 2

    k1, k2, k3, k4, k5, k6, k7 = jax.random.split(key, 7)
    x = jax.random.normal(k1, (B, T, Fin), dtype=jnp.float32)
    x_mask = jnp.ones((B, 1, T), dtype=jnp.bool_)

    # Parameter shapes follow Conv2d(1,C,3,2), Conv2d(C,C,3,2), Linear(C*F2, C).
    w1 = jax.random.normal(k2, (C, 1, 3, 3), dtype=jnp.float32) * 0.2
    b1 = jax.random.normal(k3, (C,), dtype=jnp.float32) * 0.1
    w2 = jax.random.normal(k4, (C, C, 3, 3), dtype=jnp.float32) * 0.05
    b2 = jax.random.normal(k5, (C,), dtype=jnp.float32) * 0.1
    wl = jax.random.normal(k6, (C, C * F2), dtype=jnp.float32) * 0.05
    bl = jnp.zeros((C,), dtype=jnp.float32)

    pos_table = make_sinusoidal_table(C, max_len=64)

    # --- strict check: f32 compute path, single tile ----------------------------
    y, pos_emb, mask_out = conv2d_subsampling4(
        x, x_mask, w1, b1, w2, b2, wl, bl, pos_table, offset=0,
        compute_dtype=jnp.float32)
    jax.block_until_ready(y)
    y_ref, pos_ref_, mask_ref = reference(
        x, x_mask, w1, b1, w2, b2, wl, bl, pos_table, offset=0)
    assert y.shape == (B, T2, C), y.shape
    assert pos_emb.shape == (1, T2, C), pos_emb.shape
    assert mask_out.shape == (B, 1, T2), mask_out.shape
    err = float(jnp.max(jnp.abs(y - y_ref)))
    assert jnp.allclose(y, y_ref, atol=1e-2, rtol=1e-2), f"max abs err {err}"
    assert jnp.allclose(pos_emb, pos_ref_)
    assert jnp.array_equal(mask_out, mask_ref)

    # --- default (bf16 operand) compute path -------------------------------------
    y_bf, _, _ = conv2d_subsampling4(
        x, x_mask, w1, b1, w2, b2, wl, bl, pos_table, offset=0)
    jax.block_until_ready(y_bf)
    err_bf = float(jnp.max(jnp.abs(y_bf.astype(jnp.float32) - y_ref)))
    assert err_bf < 0.25, f"bf16 path max abs err {err_bf}"

    # --- time-tiled path (multi-tile grid + padding/truncation logic) ------------
    T_long = 80
    T2_long = ((((T_long - 1) // 2) - 1) // 2)
    x2 = jax.random.normal(k7, (B, T_long, Fin), dtype=jnp.float32)
    mask2 = jnp.ones((B, 1, T_long), dtype=jnp.bool_)
    y2, pos2, m2 = conv2d_subsampling4(
        x2, mask2, w1, b1, w2, b2, wl, bl, pos_table, offset=0,
        compute_dtype=jnp.float32, tile_t2=8)
    jax.block_until_ready(y2)
    y2_ref, pos2_ref, m2_ref = reference(
        x2, mask2, w1, b1, w2, b2, wl, bl, pos_table, offset=0)
    assert y2.shape == (B, T2_long, C), y2.shape
    err2 = float(jnp.max(jnp.abs(y2 - y2_ref)))
    assert jnp.allclose(y2, y2_ref, atol=1e-2, rtol=1e-2), f"max abs err {err2}"
    assert jnp.allclose(pos2, pos2_ref)
    assert jnp.array_equal(m2, m2_ref)

    print("KERNEL_OK")
</pallas_src>

<mosaic_0001>
module attributes {stable_mosaic.version = 11 : i64} {
  func.func @_subsample4_kernel(%arg0: i32, %arg1: i32, %arg2: memref<1x4x64xf32, #tpu.memory_space<vmem>>, %arg3: memref<48x224xf32, #tpu.memory_space<vmem>>, %arg4: memref<1x224xf32, #tpu.memory_space<vmem>>, %arg5: memref<3x96x32xf32, #tpu.memory_space<vmem>>, %arg6: memref<1x32xf32, #tpu.memory_space<vmem>>, %arg7: memref<96x32xf32, #tpu.memory_space<vmem>>, %arg8: memref<1x32xf32, #tpu.memory_space<vmem>>, %arg9: memref<1x3x32xf32, #tpu.memory_space<vmem>>, %arg10: memref<1x3x32xf32, #tpu.memory_space<vmem>>, %arg11: memref<3x3x224xf32, #tpu.memory_space<vmem>>, %arg12: memref<3x96xf32, #tpu.memory_space<vmem>>) attributes {dimension_semantics = [#tpu.dimension_semantics<parallel>, #tpu.dimension_semantics<parallel>], iteration_bounds = array<i64: 2, 1>, scalar_prefetch = 0 : i64, scratch_operands = 2 : i64, tpu.core_type = #tpu.core_type<tc>, window_params = [{transform_indices = @transform_0, window_bounds = array<i64: 1, 4, 64>}, {pipeline_mode = #tpu.pipeline_mode<synchronous>, transform_indices = @transform_1, window_bounds = array<i64: 48, 224>}, {pipeline_mode = #tpu.pipeline_mode<synchronous>, transform_indices = @transform_2, window_bounds = array<i64: 1, 224>}, {pipeline_mode = #tpu.pipeline_mode<synchronous>, transform_indices = @transform_3, window_bounds = array<i64: 3, 96, 32>}, {pipeline_mode = #tpu.pipeline_mode<synchronous>, transform_indices = @transform_4, window_bounds = array<i64: 1, 32>}, {pipeline_mode = #tpu.pipeline_mode<synchronous>, transform_indices = @transform_5, window_bounds = array<i64: 96, 32>}, {pipeline_mode = #tpu.pipeline_mode<synchronous>, transform_indices = @transform_6, window_bounds = array<i64: 1, 32>}, {transform_indices = @transform_7, window_bounds = array<i64: 1, 3, 32>}, {transform_indices = @transform_8, window_bounds = array<i64: 1, 3, 32>}]} {
    %c3_i32 = arith.constant 3 : i32
    %0 = arith.muli %arg1, %c3_i32 : i32
    %c0 = arith.constant 0 : index
    %1 = arith.index_cast %0 : i32 to index
    %c0_0 = arith.constant 0 : index
    %2 = vector.load %arg2[%c0, %1, %c0_0] : memref<1x4x64xf32, #tpu.memory_space<vmem>>, vector<1x4x64xf32>
    %3 = vector.shape_cast %2 : vector<1x4x64xf32> to vector<4x64xf32>
    %4 = vector.extract_strided_slice %3 {offsets = [0, 0], sizes = [4, 48], strides = [1, 1]} : vector<4x64xf32> to vector<4x48xf32>
    %5 = vector.extract_strided_slice %3 {offsets = [0, 32], sizes = [3, 32], strides = [1, 1]} : vector<4x64xf32> to vector<3x32xf32>
    %6 = vector.extract_strided_slice %3 {offsets = [1, 0], sizes = [3, 16], strides = [1, 1]} : vector<4x64xf32> to vector<3x16xf32>
    %7 = tpu.concatenate %5, %6 in 1 : vector<3x32xf32>, vector<3x16xf32> -> vector<3x48xf32>
    %c0_1 = arith.constant 0 : index
    %c0_2 = arith.constant 0 : index
    %8 = vector.load %arg3[%c0_1, %c0_2] : memref<48x224xf32, #tpu.memory_space<vmem>>, vector<48x224xf32>
    %c0_3 = arith.constant 0 : index
    %c0_4 = arith.constant 0 : index
    %9 = vector.load %arg4[%c0_3, %c0_4] : memref<1x224xf32, #tpu.memory_space<vmem>>, vector<1x224xf32>
    %cst = arith.constant dense<0.000000e+00> : vector<4x224xf32>
    %10 = tpu.matmul %4, %8, %cst {dimension_numbers = #tpu.dot_dimension_numbers<[1], [0], [0], [1], [0, 0, 1, 1], [], []>} : vector<4x48xf32>, vector<48x224xf32>, vector<4x224xf32> -> vector<4x224xf32>
    %11 = vector.broadcast %9 : vector<1x224xf32> to vector<4x224xf32>
    %12 = arith.addf %10, %11 : vector<4x224xf32>
    %cst_5 = arith.constant 0.000000e+00 : f32
    %13 = vector.broadcast %cst_5 : f32 to vector<4x224xf32>
    %14 = arith.maximumf %12, %13 : vector<4x224xf32>
    %cst_6 = arith.constant dense<0.000000e+00> : vector<3x224xf32>
    %15 = tpu.matmul %7, %8, %cst_6 {dimension_numbers = #tpu.dot_dimension_numbers<[1], [0], [0], [1], [0, 0, 1, 1], [], []>} : vector<3x48xf32>, vector<48x224xf32>, vector<3x224xf32> -> vector<3x224xf32>
    %16 = vector.broadcast %9 : vector<1x224xf32> to vector<3x224xf32>
    %17 = arith.addf %15, %16 : vector<3x224xf32>
    %cst_7 = arith.constant 0.000000e+00 : f32
    %18 = vector.broadcast %cst_7 : f32 to vector<3x224xf32>
    %19 = arith.maximumf %17, %18 : vector<3x224xf32>
    %20 = vector.extract_strided_slice %14 {offsets = [0, 0], sizes = [3, 224], strides = [1, 1]} : vector<4x224xf32> to vector<3x224xf32>
    %c0_8 = arith.constant 0 : index
    %c0_9 = arith.constant 0 : index
    %c0_10 = arith.constant 0 : index
    %21 = vector.load %arg11[%c0_8, %c0_9, %c0_10] : memref<3x3x224xf32, #tpu.memory_space<vmem>>, vector<1x3x224xf32>
    %22 = vector.shape_cast %21 : vector<1x3x224xf32> to vector<3x224xf32>
    %23 = vector.shape_cast %20 : vector<3x224xf32> to vector<1x3x224xf32>
    tpu.vector_store %arg11[%c0_8, %c0_9, %c0_10], %23 {strides = array<i32>} : memref<3x3x224xf32, #tpu.memory_space<vmem>>, vector<1x3x224xf32>,
    %c1 = arith.constant 1 : index
    %c0_11 = arith.constant 0 : index
    %c0_12 = arith.constant 0 : index
    %24 = vector.load %arg11[%c1, %c0_11, %c0_12] : memref<3x3x224xf32, #tpu.memory_space<vmem>>, vector<1x3x224xf32>
    %25 = vector.shape_cast %24 : vector<1x3x224xf32> to vector<3x224xf32>
    %26 = vector.shape_cast %19 : vector<3x224xf32> to vector<1x3x224xf32>
    tpu.vector_store %arg11[%c1, %c0_11, %c0_12], %26 {strides = array<i32>} : memref<3x3x224xf32, #tpu.memory_space<vmem>>, vector<1x3x224xf32>,
    %27 = vector.extract_strided_slice %14 {offsets = [1, 0], sizes = [3, 224], strides = [1, 1]} : vector<4x224xf32> to vector<3x224xf32>
    %c2 = arith.constant 2 : index
    %c0_13 = arith.constant 0 : index
    %c0_14 = arith.constant 0 : index
    %28 = vector.load %arg11[%c2, %c0_13, %c0_14] : memref<3x3x224xf32, #tpu.memory_space<vmem>>, vector<1x3x224xf32>
    %29 = vector.shape_cast %28 : vector<1x3x224xf32> to vector<3x224xf32>
    %30 = vector.shape_cast %27 : vector<3x224xf32> to vector<1x3x224xf32>
    tpu.vector_store %arg11[%c2, %c0_13, %c0_14], %30 {strides = array<i32>} : memref<3x3x224xf32, #tpu.memory_space<vmem>>, vector<1x3x224xf32>,
    %c0_15 = arith.constant 0 : index
    %c0_16 = arith.constant 0 : index
    %31 = vector.load %arg6[%c0_15, %c0_16] : memref<1x32xf32, #tpu.memory_space<vmem>>, vector<1x32xf32>
    %32 = vector.shape_cast %31 : vector<1x32xf32> to vector<1x32xf32>
    %33 = vector.broadcast %32 : vector<1x32xf32> to vector<3x32xf32>
    %c0_17 = arith.constant 0 : index
    %c0_18 = arith.constant 0 : index
    %c0_19 = arith.constant 0 : index
    %34 = vector.load %arg11[%c0_17, %c0_18, %c0_19] : memref<3x3x224xf32, #tpu.memory_space<vmem>>, vector<1x3x96xf32>
    %35 = vector.shape_cast %34 : vector<1x3x96xf32> to vector<3x96xf32>
    %c0_20 = arith.constant 0 : index
    %c0_21 = arith.constant 0 : index
    %c0_22 = arith.constant 0 : index
    %36 = vector.load %arg5[%c0_20, %c0_21, %c0_22] : memref<3x96x32xf32, #tpu.memory_space<vmem>>, vector<1x96x32xf32>
    %37 = vector.shape_cast %36 : vector<1x96x32xf32> to vector<96x32xf32>
    %cst_23 = arith.constant dense<0.000000e+00> : vector<3x32xf32>
    %38 = tpu.matmul %35, %37, %cst_23 {dimension_numbers = #tpu.dot_dimension_numbers<[1], [0], [0], [1], [0, 0, 1, 1], [], []>} : vector<3x96xf32>, vector<96x32xf32>, vector<3x32xf32> -> vector<3x32xf32>
    %c1_24 = arith.constant 1 : index
    %c0_25 = arith.constant 0 : index
    %c0_26 = arith.constant 0 : index
    %39 = vector.load %arg11[%c1_24, %c0_25, %c0_26] : memref<3x3x224xf32, #tpu.memory_space<vmem>>, vector<1x3x96xf32>
    %40 = vector.shape_cast %39 : vector<1x3x96xf32> to vector<3x96xf32>
    %c1_27 = arith.constant 1 : index
    %c0_28 = arith.constant 0 : index
    %c0_29 = arith.constant 0 : index
    %41 = vector.load %arg5[%c1_27, %c0_28, %c0_29] : memref<3x96x32xf32, #tpu.memory_space<vmem>>, vector<1x96x32xf32>
    %42 = vector.shape_cast %41 : vector<1x96x32xf32> to vector<96x32xf32>
    %cst_30 = arith.constant dense<0.000000e+00> : vector<3x32xf32>
    %43 = tpu.matmul %40, %42, %cst_30 {dimension_numbers = #tpu.dot_dimension_numbers<[1], [0], [0], [1], [0, 0, 1, 1], [], []>} : vector<3x96xf32>, vector<96x32xf32>, vector<3x32xf32> -> vector<3x32xf32>
    %44 = arith.addf %38, %43 : vector<3x32xf32>
    %c2_31 = arith.constant 2 : index
    %c0_32 = arith.constant 0 : index
    %c0_33 = arith.constant 0 : index
    %45 = vector.load %arg11[%c2_31, %c0_32, %c0_33] : memref<3x3x224xf32, #tpu.memory_space<vmem>>, vector<1x3x96xf32>
    %46 = vector.shape_cast %45 : vector<1x3x96xf32> to vector<3x96xf32>
    %c2_34 = arith.constant 2 : index
    %c0_35 = arith.constant 0 : index
    %c0_36 = arith.constant 0 : index
    %47 = vector.load %arg5[%c2_34, %c0_35, %c0_36] : memref<3x96x32xf32, #tpu.memory_space<vmem>>, vector<1x96x32xf32>
    %48 = vector.shape_cast %47 : vector<1x96x32xf32> to vector<96x32xf32>
    %cst_37 = arith.constant dense<0.000000e+00> : vector<3x32xf32>
    %49 = tpu.matmul %46, %48, %cst_37 {dimension_numbers = #tpu.dot_dimension_numbers<[1], [0], [0], [1], [0, 0, 1, 1], [], []>} : vector<3x96xf32>, vector<96x32xf32>, vector<3x32xf32> -> vector<3x32xf32>
    %50 = arith.addf %44, %49 : vector<3x32xf32>
    %51 = arith.addf %50, %33 : vector<3x32xf32>
    %cst_38 = arith.constant 0.000000e+00 : f32
    %52 = vector.broadcast %cst_38 : f32 to vector<3x32xf32>
    %53 = arith.maximumf %51, %52 : vector<3x32xf32>
    %c0_39 = arith.constant 0 : index
    %c0_40 = arith.constant 0 : index
    %54 = vector.load %arg12[%c0_39, %c0_40] : memref<3x96xf32, #tpu.memory_space<vmem>>, vector<3x32xf32>
    tpu.vector_store %arg12[%c0_39, %c0_40], %53 {strides = array<i32>} : memref<3x96xf32, #tpu.memory_space<vmem>>, vector<3x32xf32>,
    %c0_41 = arith.constant 0 : index
    %c0_42 = arith.constant 0 : index
    %c64 = arith.constant 64 : index
    %55 = vector.load %arg11[%c0_41, %c0_42, %c64] : memref<3x3x224xf32, #tpu.memory_space<vmem>>, vector<1x3x96xf32>
    %56 = vector.shape_cast %55 : vector<1x3x96xf32> to vector<3x96xf32>
    %c0_43 = arith.constant 0 : index
    %c0_44 = arith.constant 0 : index
    %c0_45 = arith.constant 0 : index
    %57 = vector.load %arg5[%c0_43, %c0_44, %c0_45] : memref<3x96x32xf32, #tpu.memory_space<vmem>>, vector<1x96x32xf32>
    %58 = vector.shape_cast %57 : vector<1x96x32xf32> to vector<96x32xf32>
    %cst_46 = arith.constant dense<0.000000e+00> : vector<3x32xf32>
    %59 = tpu.matmul %56, %58, %cst_46 {dimension_numbers = #tpu.dot_dimension_numbers<[1], [0], [0], [1], [0, 0, 1, 1], [], []>} : vector<3x96xf32>, vector<96x32xf32>, vector<3x32xf32> -> vector<3x32xf32>
    %c1_47 = arith.constant 1 : index
    %c0_48 = arith.constant 0 : index
    %c64_49 = arith.constant 64 : index
    %60 = vector.load %arg11[%c1_47, %c0_48, %c64_49] : memref<3x3x224xf32, #tpu.memory_space<vmem>>, vector<1x3x96xf32>
    %61 = vector.shape_cast %60 : vector<1x3x96xf32> to vector<3x96xf32>
    %c1_50 = arith.constant 1 : index
    %c0_51 = arith.constant 0 : index
    %c0_52 = arith.constant 0 : index
    %62 = vector.load %arg5[%c1_50, %c0_51, %c0_52] : memref<3x96x32xf32, #tpu.memory_space<vmem>>, vector<1x96x32xf32>
    %63 = vector.shape_cast %62 : vector<1x96x32xf32> to vector<96x32xf32>
    %cst_53 = arith.constant dense<0.000000e+00> : vector<3x32xf32>
    %64 = tpu.matmul %61, %63, %cst_53 {dimension_numbers = #tpu.dot_dimension_numbers<[1], [0], [0], [1], [0, 0, 1, 1], [], []>} : vector<3x96xf32>, vector<96x32xf32>, vector<3x32xf32> -> vector<3x32xf32>
    %65 = arith.addf %59, %64 : vector<3x32xf32>
    %c2_54 = arith.constant 2 : index
    %c0_55 = arith.constant 0 : index
    %c64_56 = arith.constant 64 : index
    %66 = vector.load %arg11[%c2_54, %c0_55, %c64_56] : memref<3x3x224xf32, #tpu.memory_space<vmem>>, vector<1x3x96xf32>
    %67 = vector.shape_cast %66 : vector<1x3x96xf32> to vector<3x96xf32>
    %c2_57 = arith.constant 2 : index
    %c0_58 = arith.constant 0 : index
    %c0_59 = arith.constant 0 : index
    %68 = vector.load %arg5[%c2_57, %c0_58, %c0_59] : memref<3x96x32xf32, #tpu.memory_space<vmem>>, vector<1x96x32xf32>
    %69 = vector.shape_cast %68 : vector<1x96x32xf32> to vector<96x32xf32>
    %cst_60 = arith.constant dense<0.000000e+00> : vector<3x32xf32>
    %70 = tpu.matmul %67, %69, %cst_60 {dimension_numbers = #tpu.dot_dimension_numbers<[1], [0], [0], [1], [0, 0, 1, 1], [], []>} : vector<3x96xf32>, vector<96x32xf32>, vector<3x32xf32> -> vector<3x32xf32>
    %71 = arith.addf %65, %70 : vector<3x32xf32>
    %72 = arith.addf %71, %33 : vector<3x32xf32>
    %cst_61 = arith.constant 0.000000e+00 : f32
    %73 = vector.broadcast %cst_61 : f32 to vector<3x32xf32>
    %74 = arith.maximumf %72, %73 : vector<3x32xf32>
    %c0_62 = arith.constant 0 : index
    %c32 = arith.constant 32 : index
    %75 = vector.load %arg12[%c0_62, %c32] : memref<3x96xf32, #tpu.memory_space<vmem>>, vector<3x32xf32>
    tpu.vector_store %arg12[%c0_62, %c32], %74 {strides = array<i32>} : memref<3x96xf32, #tpu.memory_space<vmem>>, vector<3x32xf32>,
    %c0_63 = arith.constant 0 : index
    %c0_64 = arith.constant 0 : index
    %c128 = arith.constant 128 : index
    %76 = vector.load %arg11[%c0_63, %c0_64, %c128] : memref<3x3x224xf32, #tpu.memory_space<vmem>>, vector<1x3x96xf32>
    %77 = vector.shape_cast %76 : vector<1x3x96xf32> to vector<3x96xf32>
    %c0_65 = arith.constant 0 : index
    %c0_66 = arith.constant 0 : index
    %c0_67 = arith.constant 0 : index
    %78 = vector.load %arg5[%c0_65, %c0_66, %c0_67] : memref<3x96x32xf32, #tpu.memory_space<vmem>>, vector<1x96x32xf32>
    %79 = vector.shape_cast %78 : vector<1x96x32xf32> to vector<96x32xf32>
    %cst_68 = arith.constant dense<0.000000e+00> : vector<3x32xf32>
    %80 = tpu.matmul %77, %79, %cst_68 {dimension_numbers = #tpu.dot_dimension_numbers<[1], [0], [0], [1], [0, 0, 1, 1], [], []>} : vector<3x96xf32>, vector<96x32xf32>, vector<3x32xf32> -> vector<3x32xf32>
    %c1_69 = arith.constant 1 : index
    %c0_70 = arith.constant 0 : index
    %c128_71 = arith.constant 128 : index
    %81 = vector.load %arg11[%c1_69, %c0_70, %c128_71] : memref<3x3x224xf32, #tpu.memory_space<vmem>>, vector<1x3x96xf32>
    %82 = vector.shape_cast %81 : vector<1x3x96xf32> to vector<3x96xf32>
    %c1_72 = arith.constant 1 : index
    %c0_73 = arith.constant 0 : index
    %c0_74 = arith.constant 0 : index
    %83 = vector.load %arg5[%c1_72, %c0_73, %c0_74] : memref<3x96x32xf32, #tpu.memory_space<vmem>>, vector<1x96x32xf32>
    %84 = vector.shape_cast %83 : vector<1x96x32xf32> to vector<96x32xf32>
    %cst_75 = arith.constant dense<0.000000e+00> : vector<3x32xf32>
    %85 = tpu.matmul %82, %84, %cst_75 {dimension_numbers = #tpu.dot_dimension_numbers<[1], [0], [0], [1], [0, 0, 1, 1], [], []>} : vector<3x96xf32>, vector<96x32xf32>, vector<3x32xf32> -> vector<3x32xf32>
    %86 = arith.addf %80, %85 : vector<3x32xf32>
    %c2_76 = arith.constant 2 : index
    %c0_77 = arith.constant 0 : index
    %c128_78 = arith.constant 128 : index
    %87 = vector.load %arg11[%c2_76, %c0_77, %c128_78] : memref<3x3x224xf32, #tpu.memory_space<vmem>>, vector<1x3x96xf32>
    %88 = vector.shape_cast %87 : vector<1x3x96xf32> to vector<3x96xf32>
    %c2_79 = arith.constant 2 : index
    %c0_80 = arith.constant 0 : index
    %c0_81 = arith.constant 0 : index
    %89 = vector.load %arg5[%c2_79, %c0_80, %c0_81] : memref<3x96x32xf32, #tpu.memory_space<vmem>>, vector<1x96x32xf32>
    %90 = vector.shape_cast %89 : vector<1x96x32xf32> to vector<96x32xf32>
    %cst_82 = arith.constant dense<0.000000e+00> : vector<3x32xf32>
    %91 = tpu.matmul %88, %90, %cst_82 {dimension_numbers = #tpu.dot_dimension_numbers<[1], [0], [0], [1], [0, 0, 1, 1], [], []>} : vector<3x96xf32>, vector<96x32xf32>, vector<3x32xf32> -> vector<3x32xf32>
    %92 = arith.addf %86, %91 : vector<3x32xf32>
    %93 = arith.addf %92, %33 : vector<3x32xf32>
    %cst_83 = arith.constant 0.000000e+00 : f32
    %94 = vector.broadcast %cst_83 : f32 to vector<3x32xf32>
    %95 = arith.maximumf %93, %94 : vector<3x32xf32>
    %c0_84 = arith.constant 0 : index
    %c64_85 = arith.constant 64 : index
    %96 = vector.load %arg12[%c0_84, %c64_85] : memref<3x96xf32, #tpu.memory_space<vmem>>, vector<3x32xf32>
    tpu.vector_store %arg12[%c0_84, %c64_85], %95 {strides = array<i32>} : memref<3x96xf32, #tpu.memory_space<vmem>>, vector<3x32xf32>,
    %c0_86 = arith.constant 0 : index
    %c0_87 = arith.constant 0 : index
    %97 = vector.load %arg12[%c0_86, %c0_87] : memref<3x96xf32, #tpu.memory_space<vmem>>, vector<3x96xf32>
    %c0_88 = arith.constant 0 : index
    %c0_89 = arith.constant 0 : index
    %98 = vector.load %arg7[%c0_88, %c0_89] : memref<96x32xf32, #tpu.memory_space<vmem>>, vector<96x32xf32>
    %cst_90 = arith.constant dense<0.000000e+00> : vector<3x32xf32>
    %99 = tpu.matmul %97, %98, %cst_90 {dimension_numbers = #tpu.dot_dimension_numbers<[1], [0], [0], [1], [0, 0, 1, 1], [], []>} : vector<3x96xf32>, vector<96x32xf32>, vector<3x32xf32> -> vector<3x32xf32>
    %c0_91 = arith.constant 0 : index
    %c0_92 = arith.constant 0 : index
    %100 = vector.load %arg8[%c0_91, %c0_92] : memref<1x32xf32, #tpu.memory_space<vmem>>, vector<1x32xf32>
    %101 = vector.broadcast %100 : vector<1x32xf32> to vector<3x32xf32>
    %102 = arith.addf %99, %101 : vector<3x32xf32>
    %c0_93 = arith.constant 0 : index
    %c0_94 = arith.constant 0 : index
    %c0_95 = arith.constant 0 : index
    %103 = vector.load %arg9[%c0_93, %c0_94, %c0_95] : memref<1x3x32xf32, #tpu.memory_space<vmem>>, vector<1x3x32xf32>
    %104 = vector.shape_cast %103 : vector<1x3x32xf32> to vector<3x32xf32>
    %105 = arith.addf %102, %104 : vector<3x32xf32>
    %c0_96 = arith.constant 0 : index
    %c0_97 = arith.constant 0 : index
    %c0_98 = arith.constant 0 : index
    %106 = vector.load %arg10[%c0_96, %c0_97, %c0_98] : memref<1x3x32xf32, #tpu.memory_space<vmem>>, vector<1x3x32xf32>
    %107 = vector.shape_cast %106 : vector<1x3x32xf32> to vector<3x32xf32>
    %108 = vector.shape_cast %105 : vector<3x32xf32> to vector<1x3x32xf32>
    tpu.vector_store %arg10[%c0_96, %c0_97, %c0_98], %108 {strides = array<i32>} : memref<1x3x32xf32, #tpu.memory_space<vmem>>, vector<1x3x32xf32>,
    return
  }
  func.func @transform_0(%arg0: i32, %arg1: i32) -> (i32, i32, i32) {
    %c0_i32 = arith.constant 0 : i32
    %c0_i32_0 = arith.constant 0 : i32
    %c0_i32_1 = arith.constant 0 : i32
    return %arg0, %c0_i32, %c0_i32_0 : i32, i32, i32
  }
  func.func @transform_1(%arg0: i32, %arg1: i32) -> (i32, i32) {
    %c0_i32 = arith.constant 0 : i32
    %c0_i32_0 = arith.constant 0 : i32
    %c0_i32_1 = arith.constant 0 : i32
    return %c0_i32, %c0_i32_0 : i32, i32
  }
  func.func @transform_2(%arg0: i32, %arg1: i32) -> (i32, i32) {
    %c0_i32 = arith.constant 0 : i32
    %c0_i32_0 = arith.constant 0 : i32
    %c0_i32_1 = arith.constant 0 : i32
    return %c0_i32, %c0_i32_0 : i32, i32
  }
  func.func @transform_3(%arg0: i32, %arg1: i32) -> (i32, i32, i32) {
    %c0_i32 = arith.constant 0 : i32
    %c0_i32_0 = arith.constant 0 : i32
    %c0_i32_1 = arith.constant 0 : i32
    %c0_i32_2 = arith.constant 0 : i32
    return %c0_i32, %c0_i32_0, %c0_i32_1 : i32, i32, i32
  }
  func.func @transform_4(%arg0: i32, %arg1: i32) -> (i32, i32) {
    %c0_i32 = arith.constant 0 : i32
    %c0_i32_0 = arith.constant 0 : i32
    %c0_i32_1 = arith.constant 0 : i32
    return %c0_i32, %c0_i32_0 : i32, i32
  }
  func.func @transform_5(%arg0: i32, %arg1: i32) -> (i32, i32) {
    %c0_i32 = arith.constant 0 : i32
    %c0_i32_0 = arith.constant 0 : i32
    %c0_i32_1 = arith.constant 0 : i32
    return %c0_i32, %c0_i32_0 : i32, i32
  }
  func.func @transform_6(%arg0: i32, %arg1: i32) -> (i32, i32) {
    %c0_i32 = arith.constant 0 : i32
    %c0_i32_0 = arith.constant 0 : i32
    %c0_i32_1 = arith.constant 0 : i32
    return %c0_i32, %c0_i32_0 : i32, i32
  }
  func.func @transform_7(%arg0: i32, %arg1: i32) -> (i32, i32, i32) {
    %c0_i32 = arith.constant 0 : i32
    %c0_i32_0 = arith.constant 0 : i32
    %c0_i32_1 = arith.constant 0 : i32
    return %c0_i32, %arg1, %c0_i32_0 : i32, i32, i32
  }
  func.func @transform_8(%arg0: i32, %arg1: i32) -> (i32, i32, i32) {
    %c0_i32 = arith.constant 0 : i32
    %c0_i32_0 = arith.constant 0 : i32
    return %arg0, %arg1, %c0_i32 : i32, i32, i32
  }
}

</mosaic_0001>

<llo_original>
// kernel: tpu_custom_call.1
$region0: #{tpu_custom_call.1}
  #allocation0 [shape = 'u32[]', space=smem, size = 0x4, offset = 0x4, fixed_abs, tag = 'smem constant byte address 0x4 - core index']
  #allocation1 [shape = 'u32[144,128]{1,0:T(1,128)}', space=vmem, size = 0x12000, scoped, tag = 'internal scratch']
  #allocation2 [shape = 'f32[3,3,224]{2,1,0:T(4,128)}', space=vmem, size = 0x3000, scoped, tag = 'scratch operand']
  #allocation3 [shape = 'f32[3,96]{1,0:T(4,128)}', space=vmem, size = 0x800, scoped, tag = 'scratch operand']
  %s0 = inlined_call_operand.vmem [shape: f32[2,4,64], index: 0, kind: input, shape index: {}]
  %s1 = inlined_call_operand.vmem [shape: f32[48,224], index: 1, kind: input, shape index: {}]
  %s2 = inlined_call_operand.vmem [shape: f32[1,224], index: 2, kind: input, shape index: {}]
  %s3 = inlined_call_operand.vmem [shape: f32[3,96,32], index: 3, kind: input, shape index: {}]
  %s4 = inlined_call_operand.vmem [shape: f32[1,32], index: 4, kind: input, shape index: {}]
  %s5 = inlined_call_operand.vmem [shape: f32[96,32], index: 5, kind: input, shape index: {}]
  %s6 = inlined_call_operand.vmem [shape: f32[1,32], index: 6, kind: input, shape index: {}]
  %s7 = inlined_call_operand.vmem [shape: f32[1,3,32], index: 7, kind: input, shape index: {}]
  %s8 = inlined_call_operand.vmem [shape: f32[2,3,32], index: 8, kind: output, shape index: {}]
  %s9 = sld [smem:[#allocation0]]
  $region65: #{tpu_custom_call.1} parent=0
    _
  %s11 = ssub.s32 1, %s9
  %s12 = scalar_select 0, %s11, %s9
  loop: start=0, step=1, limit=4
  $region2: #{tpu_custom_call.1} parent=0 // loop_pre_header
    _
  $region3: #{tpu_custom_call.1} parent=0 // loop_header
    %s14 = sphi 0, %s18
    %p15 = scmp.ge.s32.totalorder %s14, 4
    %s21 = sphi 0, %s33
    %s22 = sphi 0, %s29
    %s23 = sphi 0, %s21
    %s24 = sphi 0, %s22
    %s25 = sphi 0, %s23
    %s26 = sphi 0, %s24
    %s36 = sphi 0, %s38
    %s39 = sphi 0, %s36
    %s40 = sphi 0, %s39
    %s56 = sphi 0, %s40
    %s60 = sphi 0, %s60
    %s62 = sphi 0, %s60
    %s63 = sphi 0, %s62
    %s77 = sphi 0, %s63
    %s81 = sphi 0, %s81
    %s83 = sphi 0, %s81
    %s84 = sphi 0, %s83
    %s98 = sphi 0, %s84
    %s102 = sphi 0, %s102
    %s104 = sphi 0, %s102
    %s105 = sphi 0, %s104
    %s119 = sphi 0, %s105
    %s123 = sphi 0, %s123
    %s125 = sphi 0, %s123
    %s126 = sphi 0, %s125
    %s140 = sphi 0, %s126
    %s144 = sphi 0, %s144
    %s146 = sphi 0, %s144
    %s147 = sphi 0, %s146
    %s161 = sphi 0, %s147
    %s165 = sphi 0, %s165
    %s167 = sphi 0, %s165
    %s168 = sphi 0, %s167
    %s182 = sphi 0, %s168
    %s188 = sphi 0, %s190
    %s191 = sphi 0, %s188
    %s192 = sphi 0, %s191
    %s208 = sphi 0, %s192
    %s216 = sphi 0, %s218
    %s219 = sphi 0, %s216
    %s220 = sphi 0, %s219
    %s236 = sphi 0, %s220
  $region4: #{tpu_custom_call.1} parent=0 // loop_header_branch
    %17 = sbr.rel (%p15) target = $region8
  $region5: #{tpu_custom_call.1} parent=0 // loop_body
    %s19 = ssub.s32 %s14, 1
    %s20 = ssub.s32 %s14, 2
    %s27 = sadd.s32 1, %s22
    %p28 = scmp.ge.s32.totalorder %s27, 1
    %s29 = scalar_select %p28, 0, %s27
    %s30 = sadd.s32 1, %s21
    %s31 = scalar_select %p28, %s30, %s21
    %p32 = scmp.ge.s32.totalorder %s31, 2
    %s33 = scalar_select %p32, 0, %s31
    %s34 = ssub.s32 %s21, %s33
    %p35 = scmp.eq.s32.totalorder %s34, 0
    %s37 = sadd.s32 %s36, 1
    %s38 = scalar_select %p35, %s36, %s37
    %p41 = pneg %p35
    %p42 = scmp.eq.s32.totalorder %s14, 1
    %p43 = por %p41, %p42
    %p44 = scmp.ne.s32.totalorder %s36, %s39
    %p45 = scmp.eq.s32.totalorder %s14, 0
    %p46 = por %p44, %p45
    %p47 = scmp.ne.s32.totalorder %s36, %s39
    %p48 = scmp.eq.s32.totalorder %s19, 1
    %p49 = por %p47, %p48
    %p50 = scmp.ne.s32.totalorder %s39, %s40
    %p51 = scmp.eq.s32.totalorder %s19, 0
    %p52 = por %p50, %p51
    %p53 = scmp.ne.s32.totalorder %s39, %s40
    %p54 = scmp.eq.s32.totalorder %s20, 1
    %p55 = por %p53, %p54
    %p57 = scmp.ne.s32.totalorder %s40, %s56
    %p58 = scmp.eq.s32.totalorder %s20, 0
    %p59 = por %p57, %p58
    %s61 = sadd.s32 %s60, 1
    %p64 = scmp.eq.s32.totalorder %s14, 1
    %p65 = scmp.ne.s32.totalorder %s60, %s62
    %p66 = scmp.eq.s32.totalorder %s14, 0
    %p67 = por %p65, %p66
    %p68 = scmp.ne.s32.totalorder %s60, %s62
    %p69 = scmp.eq.s32.totalorder %s19, 1
    %p70 = por %p68, %p69
    %p71 = scmp.ne.s32.totalorder %s62, %s63
    %p72 = scmp.eq.s32.totalorder %s19, 0
    %p73 = por %p71, %p72
    %p74 = scmp.ne.s32.totalorder %s62, %s63
    %p75 = scmp.eq.s32.totalorder %s20, 1
    %p76 = por %p74, %p75
    %p78 = scmp.ne.s32.totalorder %s63, %s77
    %p79 = scmp.eq.s32.totalorder %s20, 0
    %p80 = por %p78, %p79
    %s82 = sadd.s32 %s81, 1
    %p85 = scmp.eq.s32.totalorder %s14, 1
    %p86 = scmp.ne.s32.totalorder %s81, %s83
    %p87 = scmp.eq.s32.totalorder %s14, 0
    %p88 = por %p86, %p87
    %p89 = scmp.ne.s32.totalorder %s81, %s83
    %p90 = scmp.eq.s32.totalorder %s19, 1
    %p91 = por %p89, %p90
    %p92 = scmp.ne.s32.totalorder %s83, %s84
    %p93 = scmp.eq.s32.totalorder %s19, 0
    %p94 = por %p92, %p93
    %p95 = scmp.ne.s32.totalorder %s83, %s84
    %p96 = scmp.eq.s32.totalorder %s20, 1
    %p97 = por %p95, %p96
    %p99 = scmp.ne.s32.totalorder %s84, %s98
    %p100 = scmp.eq.s32.totalorder %s20, 0
    %p101 = por %p99, %p100
    %s103 = sadd.s32 %s102, 1
    %p106 = scmp.eq.s32.totalorder %s14, 1
    %p107 = scmp.ne.s32.totalorder %s102, %s104
    %p108 = scmp.eq.s32.totalorder %s14, 0
    %p109 = por %p107, %p108
    %p110 = scmp.ne.s32.totalorder %s102, %s104
    %p111 = scmp.eq.s32.totalorder %s19, 1
    %p112 = por %p110, %p111
    %p113 = scmp.ne.s32.totalorder %s104, %s105
    %p114 = scmp.eq.s32.totalorder %s19, 0
    %p115 = por %p113, %p114
    %p116 = scmp.ne.s32.totalorder %s104, %s105
    %p117 = scmp.eq.s32.totalorder %s20, 1
    %p118 = por %p116, %p117
    %p120 = scmp.ne.s32.totalorder %s105, %s119
    %p121 = scmp.eq.s32.totalorder %s20, 0
    %p122 = por %p120, %p121
    %s124 = sadd.s32 %s123, 1
    %p127 = scmp.eq.s32.totalorder %s14, 1
    %p128 = scmp.ne.s32.totalorder %s123, %s125
    %p129 = scmp.eq.s32.totalorder %s14, 0
    %p130 = por %p128, %p129
    %p131 = scmp.ne.s32.totalorder %s123, %s125
    %p132 = scmp.eq.s32.totalorder %s19, 1
    %p133 = por %p131, %p132
    %p134 = scmp.ne.s32.totalorder %s125, %s126
    %p135 = scmp.eq.s32.totalorder %s19, 0
    %p136 = por %p134, %p135
    %p137 = scmp.ne.s32.totalorder %s125, %s126
    %p138 = scmp.eq.s32.totalorder %s20, 1
    %p139 = por %p137, %p138
    %p141 = scmp.ne.s32.totalorder %s126, %s140
    %p142 = scmp.eq.s32.totalorder %s20, 0
    %p143 = por %p141, %p142
    %s145 = sadd.s32 %s144, 1
    %p148 = scmp.eq.s32.totalorder %s14, 1
    %p149 = scmp.ne.s32.totalorder %s144, %s146
    %p150 = scmp.eq.s32.totalorder %s14, 0
    %p151 = por %p149, %p150
    %p152 = scmp.ne.s32.totalorder %s144, %s146
    %p153 = scmp.eq.s32.totalorder %s19, 1
    %p154 = por %p152, %p153
    %p155 = scmp.ne.s32.totalorder %s146, %s147
    %p156 = scmp.eq.s32.totalorder %s19, 0
    %p157 = por %p155, %p156
    %p158 = scmp.ne.s32.totalorder %s146, %s147
    %p159 = scmp.eq.s32.totalorder %s20, 1
    %p160 = por %p158, %p159
    %p162 = scmp.ne.s32.totalorder %s147, %s161
    %p163 = scmp.eq.s32.totalorder %s20, 0
    %p164 = por %p162, %p163
    %s166 = sadd.s32 %s165, 1
    %p169 = scmp.eq.s32.totalorder %s14, 1
    %p170 = scmp.ne.s32.totalorder %s165, %s167
    %p171 = scmp.eq.s32.totalorder %s14, 0
    %p172 = por %p170, %p171
    %p173 = scmp.ne.s32.totalorder %s165, %s167
    %p174 = scmp.eq.s32.totalorder %s19, 1
    %p175 = por %p173, %p174
    %p176 = scmp.ne.s32.totalorder %s167, %s168
    %p177 = scmp.eq.s32.totalorder %s19, 0
    %p178 = por %p176, %p177
    %p179 = scmp.ne.s32.totalorder %s167, %s168
    %p180 = scmp.eq.s32.totalorder %s20, 1
    %p181 = por %p179, %p180
    %p183 = scmp.ne.s32.totalorder %s168, %s182
    %p184 = scmp.eq.s32.totalorder %s20, 0
    %p185 = por %p183, %p184
    %s186 = ssub.s32 %s22, %s29
    %p187 = scmp.eq.s32.totalorder %s186, 0
    %s189 = sadd.s32 %s188, 1
    %s190 = scalar_select %p187, %s188, %s189
    %p193 = pneg %p187
    %p194 = scmp.eq.s32.totalorder %s14, 1
    %p195 = por %p193, %p194
    %p196 = scmp.ne.s32.totalorder %s188, %s191
    %p197 = scmp.eq.s32.totalorder %s14, 0
    %p198 = por %p196, %p197
    %p199 = scmp.ne.s32.totalorder %s188, %s191
    %p200 = scmp.eq.s32.totalorder %s19, 1
    %p201 = por %p199, %p200
    %p202 = scmp.ne.s32.totalorder %s191, %s192
    %p203 = scmp.eq.s32.totalorder %s19, 0
    %p204 = por %p202, %p203
    %p205 = scmp.ne.s32.totalorder %s191, %s192
    %p206 = scmp.eq.s32.totalorder %s20, 1
    %p207 = por %p205, %p206
    %p209 = scmp.ne.s32.totalorder %s192, %s208
    %p210 = scmp.eq.s32.totalorder %s20, 0
    %p211 = por %p209, %p210
    %s212 = ssub.s32 %s21, %s33
    %s213 = ssub.s32 %s22, %s29
    %s214 = sor.u32 %s212, %s213
    %p215 = scmp.eq.s32.totalorder %s214, 0
    %s217 = sadd.s32 %s216, 1
    %s218 = scalar_select %p215, %s216, %s217
    %p221 = pneg %p215
    %p222 = scmp.eq.s32.totalorder %s14, 1
    %p223 = por %p221, %p222
    %p224 = scmp.ne.s32.totalorder %s216, %s219
    %p225 = scmp.eq.s32.totalorder %s14, 0
    %p226 = por %p224, %p225
    %p227 = scmp.ne.s32.totalorder %s216, %s219
    %p228 = scmp.eq.s32.totalorder %s19, 1
    %p229 = por %p227, %p228
    %p230 = scmp.ne.s32.totalorder %s219, %s220
    %p231 = scmp.eq.s32.totalorder %s19, 0
    %p232 = por %p230, %p231
    %p233 = scmp.ne.s32.totalorder %s219, %s220
    %p234 = scmp.eq.s32.totalorder %s20, 1
    %p235 = por %p233, %p234
    %p237 = scmp.ne.s32.totalorder %s220, %s236
    %p238 = scmp.eq.s32.totalorder %s20, 0
    %p239 = por %p237, %p238
    %p240 = scmp.le.s32.totalorder 1, %s14
    %p241 = scmp.lt.s32.totalorder %s14, 3
    %p242 = pnand %p240, %p241
    %p243 = pneg %p242
    // Predicated region
    $region9: #{tpu_custom_call.1} parent=5 // pred_check
      _
    $region10: #{tpu_custom_call.1} parent=5 // pred_check_branch
      %245 = sbr.rel (%p242) target = $region12
    $region11: #{tpu_custom_call.1} parent=5 // pred_region
      %s246 = ssub.s32 %s14, 1
      // Predicated region
      $region13: #{tpu_custom_call.1} parent=11 // pred_check
        %p247 = pneg %p73
      $region14: #{tpu_custom_call.1} parent=11 // pred_check_branch
        %249 = sbr.rel (%p247) target = $region16
      $region15: #{tpu_custom_call.1} parent=11 // pred_region
        _
      $region16: #{tpu_custom_call.1} parent=11 // pred_fallthru
        _
      // Predicated region
      $region17: #{tpu_custom_call.1} parent=11 // pred_check
        %p250 = pneg %p94
      $region18: #{tpu_custom_call.1} parent=11 // pred_check_branch
        %252 = sbr.rel (%p250) target = $region20
      $region19: #{tpu_custom_call.1} parent=11 // pred_region
        _
      $region20: #{tpu_custom_call.1} parent=11 // pred_fallthru
        _
      // Predicated region
      $region21: #{tpu_custom_call.1} parent=11 // pred_check
        %p253 = pneg %p115
      $region22: #{tpu_custom_call.1} parent=11 // pred_check_branch
        %255 = sbr.rel (%p253) target = $region24
      $region23: #{tpu_custom_call.1} parent=11 // pred_region
        _
      $region24: #{tpu_custom_call.1} parent=11 // pred_fallthru
        _
      // Predicated region
      $region25: #{tpu_custom_call.1} parent=11 // pred_check
        %p256 = pneg %p136
      $region26: #{tpu_custom_call.1} parent=11 // pred_check_branch
        %258 = sbr.rel (%p256) target = $region28
      $region27: #{tpu_custom_call.1} parent=11 // pred_region
        _
      $region28: #{tpu_custom_call.1} parent=11 // pred_fallthru
        _
      // Predicated region
      $region29: #{tpu_custom_call.1} parent=11 // pred_check
        %p259 = pneg %p157
      $region30: #{tpu_custom_call.1} parent=11 // pred_check_branch
        %261 = sbr.rel (%p259) target = $region32
      $region31: #{tpu_custom_call.1} parent=11 // pred_region
        _
      $region32: #{tpu_custom_call.1} parent=11 // pred_fallthru
        _
      // Predicated region
      $region33: #{tpu_custom_call.1} parent=11 // pred_check
        %p262 = pneg %p178
      $region34: #{tpu_custom_call.1} parent=11 // pred_check_branch
        %264 = sbr.rel (%p262) target = $region36
      $region35: #{tpu_custom_call.1} parent=11 // pred_region
        _
      $region36: #{tpu_custom_call.1} parent=11 // pred_fallthru
        _
      // Predicated region
      $region37: #{tpu_custom_call.1} parent=11 // pred_check
        %p265 = pneg %p204
      $region38: #{tpu_custom_call.1} parent=11 // pred_check_branch
        %267 = sbr.rel (%p265) target = $region40
      $region39: #{tpu_custom_call.1} parent=11 // pred_region
        %p268 = scmp.lt.s32.totalorder %s24, 0
        %s269 = scalar_select %p268, %s24, 0
        %s270 = smul.addr %s269, 4
        %s271 = scalar_lea.vmem %s7, %s270
      $region40: #{tpu_custom_call.1} parent=11 // pred_fallthru
        _
    $region12: #{tpu_custom_call.1} parent=5 // pred_fallthru
      _
    %p272 = scmp.lt.s32.totalorder %s14, 2
    // Predicated region
    $region41: #{tpu_custom_call.1} parent=5 // pred_check
      %p273 = pneg %p272
    $region42: #{tpu_custom_call.1} parent=5 // pred_check_branch
      %275 = sbr.rel (%p273) target = $region44
    $region43: #{tpu_custom_call.1} parent=5 // pred_region
      // Predicated region
      $region45: #{tpu_custom_call.1} parent=43 // pred_check
        %p276 = pneg %p46
      $region46: #{tpu_custom_call.1} parent=43 // pred_check_branch
        %278 = sbr.rel (%p276) target = $region48
      $region47: #{tpu_custom_call.1} parent=43 // pred_region
        %p279 = scmp.lt.s32.totalorder %s21, 1
        %s280 = scalar_select %p279, %s21, 1
        %s281 = smul.addr %s280, 4
        %s282 = scalar_lea.vmem %s0, %s281
      $region48: #{tpu_custom_call.1} parent=43 // pred_fallthru
        _
    $region44: #{tpu_custom_call.1} parent=5 // pred_fallthru
      _
    %p283 = scmp.le.s32.totalorder 1, %s14
    %p284 = scmp.lt.s32.totalorder %s14, 3
    %p285 = pnand %p283, %p284
    %p286 = pneg %p285
    // Predicated region
    $region49: #{tpu_custom_call.1} parent=5 // pred_check
      _
    $region50: #{tpu_custom_call.1} parent=5 // pred_check_branch
      %288 = sbr.rel (%p285) target = $region52
    $region51: #{tpu_custom_call.1} parent=5 // pred_region
      %s289 = ssub.s32 %s14, 1
      %p290 = scmp.lt.s32.totalorder %s23, 1
      %s291 = scalar_select %p290, %s23, 1
      %s292 = smul.addr %s291, 4
      %s293 = scalar_lea.vmem %s0, %s292
      %p294 = pneg %p52
      %p295 = pneg %p49
      %p296 = pneg %p73
      %p297 = pneg %p70
      %p298 = pneg %p94
      %p299 = pneg %p91
      %p300 = pneg %p115
      %p301 = pneg %p112
      %p302 = pneg %p136
      %p303 = pneg %p133
      %p304 = pneg %p157
      %p305 = pneg %p154
      %p306 = pneg %p178
      %p307 = pneg %p175
      %p308 = scmp.lt.s32.totalorder %s24, 0
      %s309 = scalar_select %p308, %s24, 0
      %s310 = smul.addr %s309, 4
      %s311 = scalar_lea.vmem %s7, %s310
      %p312 = pneg %p204
      %p313 = pneg %p201
      %p314 = pneg %p232
      %p315 = pneg %p229
      %p316 = scmp.lt.s32.totalorder %s23, 1
      %s317 = scalar_select %p316, %s23, 1
      %p318 = scmp.lt.s32.totalorder %s24, 0
      %s319 = scalar_select %p318, %s24, 0
      %s320 = sadd.s32 %s319, %s317
      %s321 = smul.addr %s320, 4
      %s322 = scalar_lea.vmem %s8, %s321
      %p323 = scmp.lt.s32.totalorder %s23, 1
      %s324 = scalar_select %p323, %s23, 1
      %s325 = smul.addr %s324, 4
      %s326 = scalar_lea.vmem %s0, %s325
      %p327 = scmp.lt.s32.totalorder %s24, 0
      %s328 = scalar_select %p327, %s24, 0
      %s329 = smul.addr %s328, 4
      %s330 = scalar_lea.vmem %s7, %s329
      %p331 = scmp.lt.s32.totalorder %s23, 1
      %s332 = scalar_select %p331, %s23, 1
      %p333 = scmp.lt.s32.totalorder %s24, 0
      %s334 = scalar_select %p333, %s24, 0
      %s335 = sadd.s32 %s334, %s332
      %s336 = smul.addr %s335, 4
      %s337 = scalar_lea.vmem %s8, %s336
      %s338 = smul.u32 %s24, 3
      %s339 = scalar_lea.vmem %s326, %s338
      %v340 = vld [vmem:[%s339] sm:$0xf]
      %342 = vrot.lane.b32.xlu0 %v340, 96
      %v343 = vpop.permute.xlu0 %342
      %v345 = vrot.slane %v340, 1
      %346 = vrot.lane.b32.xlu0 %v345, 32
      %v347 = vpop.permute.xlu0 %346
      %vm349 = vcmask 261120
      %v350 = vsel %vm349, %v343, %v347
      %v351 = vld [vmem:[%s1] sm:$0xff]
      %v352 = vld [vmem:[%s1 + $0x8] sm:$0xff]
      %v353 = vld [vmem:[%s1 + $0x10] sm:$0xff]
      %v354 = vld [vmem:[%s1 + $0x18] sm:$0xff]
      %v355 = vld [vmem:[%s1 + $0x20] sm:$0xff]
      %v356 = vld [vmem:[%s1 + $0x28] sm:$0xff]
      %v357 = vld [vmem:[%s1 + $0x30] sm:$0xff]
      %v358 = vld [vmem:[%s1 + $0x38] sm:$0xff]
      %v359 = vld [vmem:[%s1 + $0x40] sm:$0xff]
      %v360 = vld [vmem:[%s1 + $0x48] sm:$0xff]
      %v361 = vld [vmem:[%s1 + $0x50] sm:$0xff]
      %v362 = vld [vmem:[%s1 + $0x58] sm:$0xff]
      %v363 = vld [vmem:[%s2] sm:$0x3]
      %v365 = vlaneseq
      %v366 = vshrl.u32 %v365, 7
      %v367 = vsub.s32 0, %v366
      %v368 = vrot.slane %v363, %v367
      %v369 = vlaneseq
      %v370 = vshrl.u32 %v369, 7
      %v371 = vsub.s32 1, %v370
      %v372 = vrot.slane %v363, %v371
      %vm375 = vcmask 392192
      %v376 = vsel %vm375, %v340, 0
      %378 = vmatprep.subr.mxu0 %v352
      %379 = vmatpush1.msra.mxu0 %v351
      %380 = vmatprep.subr.mxu0 %v354
      %381 = vmatpush1.msra.mxu0 %v353
      %382 = vmatprep.subr.mxu0 %v356
      %383 = vmatpush1.msra.mxu0 %v355
      %384 = vmatprep.subr.mxu0 %v358
      %385 = vmatpush1.msra.mxu0 %v357
      %386 = vmatprep.subr.mxu0 %v360
      %387 = vmatpush1.msra.mxu0 %v359
      %388 = vmatprep.subr.mxu0 %v362
      %389 = vmatpush1.msra.mxu0 %v361
      %390 = vmatprep.subr.mxu0 0.0
      %391 = vmatpush1.msra.mxu0 0.0
      %392 = vmatprep.subr.mxu0 0.0
      %393 = vmatpush1.msra.mxu0 0.0
      %394 = vmatprep.subr.mxu0 0.0
      %395 = vmatpush1.msra.mxu0 0.0
      %396 = vmatprep.subr.mxu0 0.0
      %397 = vmatpush1.msra.mxu0 0.0
      %398 = vmatprep.subr.mxu0 0.0
      %399 = vmatpush1.msra.mxu0 0.0
      %400 = vmatprep.subr.mxu0 0.0
      %401 = vmatpush1.msra.mxu0 0.0
      %402 = vmatprep.subr.mxu0 0.0
      %403 = vmatpush1.msra.mxu0 0.0
      %404 = vmatprep.subr.mxu0 0.0
      %405 = vmatpush1.msra.mxu0 0.0
      %406 = vmatprep.subr.mxu0 0.0
      %407 = vmatpush1.msra.mxu0 0.0
      %408 = vmatprep.subr.mxu0 0.0
      %409 = vmatpush1.msra.mxu0 0.0
      %410 = vmatprep.subr.mxu0 0.0
      %411 = vmatpush1.msra.mxu0 0.0
      %412 = vmatprep.subr.mxu0 0.0
      %413 = vmatpush1.msra.mxu0 0.0
      %414 = vmatprep.subr.mxu0 0.0
      %415 = vmatpush1.msra.mxu0 0.0
      %416 = vmatprep.subr.mxu0 0.0
      %417 = vmatpush1.msra.mxu0 0.0
      %418 = vmatprep.subr.mxu0 0.0
      %419 = vmatpush1.msra.mxu0 0.0
      %420 = vmatprep.subr.mxu0 0.0
      %421 = vmatpush1.msra.mxu0 0.0
      %422 = vmatprep.subr.mxu0 0.0
      %423 = vmatpush1.msra.mxu0 0.0
      %424 = vmatprep.subr.mxu0 0.0
      %425 = vmatpush1.msra.mxu0 0.0
      %426 = vmatprep.subr.mxu0 0.0
      %427 = vmatpush1.msra.mxu0 0.0
      %428 = vmatprep.subr.mxu0 0.0
      %429 = vmatpush1.msra.mxu0 0.0
      %430 = vmatprep.subr.mxu0 0.0
      %431 = vmatpush1.msra.mxu0 0.0
      %432 = vmatprep.subr.mxu0 0.0
      %433 = vmatpush1.msra.mxu0 0.0
      %434 = vmatprep.subr.mxu0 0.0
      %435 = vmatpush1.msra.mxu0 0.0
      %436 = vmatprep.subr.mxu0 0.0
      %437 = vmatpush1.msra.mxu0 0.0
      %438 = vmatprep.subr.mxu0 0.0
      %439 = vmatpush1.msra.mxu0 0.0
      %440 = vmatprep.subr.mxu0 0.0
      %441 = vmatpush1.msra.mxu0 0.0
      %442 = vmatprep.mubr.f32.mxu0 0.0
      %443 = vmatmul.mubr.f32.gmra.mrb[0].mxu0 %v376
      %v444 = vpop.f32.mrb[0].mxu0
      %v445 = vadd.f32 %v368, %v444
      %v446 = vpop.f32.mrb[0].mxu0
      %v447 = vadd.f32 %v372, %v446
      %448 = vdwg.mxu0
      %v449 = vmax.f32 %v445, 0.0
      %v450 = vmax.f32 %v447, 0.0
      %v452 = vsel %vm375, %v350, 0
      %454 = vmatprep.subr.mxu0 %v352
      %455 = vmatpush1.msra.mxu0 %v351
      %456 = vmatprep.subr.mxu0 %v354
      %457 = vmatpush1.msra.mxu0 %v353
      %458 = vmatprep.subr.mxu0 %v356
      %459 = vmatpush1.msra.mxu0 %v355
      %460 = vmatprep.subr.mxu0 %v358
      %461 = vmatpush1.msra.mxu0 %v357
      %462 = vmatprep.subr.mxu0 %v360
      %463 = vmatpush1.msra.mxu0 %v359
      %464 = vmatprep.subr.mxu0 %v362
      %465 = vmatpush1.msra.mxu0 %v361
      %466 = vmatprep.subr.mxu0 0.0
      %467 = vmatpush1.msra.mxu0 0.0
      %468 = vmatprep.subr.mxu0 0.0
      %469 = vmatpush1.msra.mxu0 0.0
      %470 = vmatprep.subr.mxu0 0.0
      %471 = vmatpush1.msra.mxu0 0.0
      %472 = vmatprep.subr.mxu0 0.0
      %473 = vmatpush1.msra.mxu0 0.0
      %474 = vmatprep.subr.mxu0 0.0
      %475 = vmatpush1.msra.mxu0 0.0
      %476 = vmatprep.subr.mxu0 0.0
      %477 = vmatpush1.msra.mxu0 0.0
      %478 = vmatprep.subr.mxu0 0.0
      %479 = vmatpush1.msra.mxu0 0.0
      %480 = vmatprep.subr.mxu0 0.0
      %481 = vmatpush1.msra.mxu0 0.0
      %482 = vmatprep.subr.mxu0 0.0
      %483 = vmatpush1.msra.mxu0 0.0
      %484 = vmatprep.subr.mxu0 0.0
      %485 = vmatpush1.msra.mxu0 0.0
      %486 = vmatprep.subr.mxu0 0.0
      %487 = vmatpush1.msra.mxu0 0.0
      %488 = vmatprep.subr.mxu0 0.0
      %489 = vmatpush1.msra.mxu0 0.0
      %490 = vmatprep.subr.mxu0 0.0
      %491 = vmatpush1.msra.mxu0 0.0
      %492 = vmatprep.subr.mxu0 0.0
      %493 = vmatpush1.msra.mxu0 0.0
      %494 = vmatprep.subr.mxu0 0.0
      %495 = vmatpush1.msra.mxu0 0.0
      %496 = vmatprep.subr.mxu0 0.0
      %497 = vmatpush1.msra.mxu0 0.0
      %498 = vmatprep.subr.mxu0 0.0
      %499 = vmatpush1.msra.mxu0 0.0
      %500 = vmatprep.subr.mxu0 0.0
      %501 = vmatpush1.msra.mxu0 0.0
      %502 = vmatprep.subr.mxu0 0.0
      %503 = vmatpush1.msra.mxu0 0.0
      %504 = vmatprep.subr.mxu0 0.0
      %505 = vmatpush1.msra.mxu0 0.0
      %506 = vmatprep.subr.mxu0 0.0
      %507 = vmatpush1.msra.mxu0 0.0
      %508 = vmatprep.subr.mxu0 0.0
      %509 = vmatpush1.msra.mxu0 0.0
      %510 = vmatprep.subr.mxu0 0.0
      %511 = vmatpush1.msra.mxu0 0.0
      %512 = vmatprep.subr.mxu0 0.0
      %513 = vmatpush1.msra.mxu0 0.0
      %514 = vmatprep.subr.mxu0 0.0
      %515 = vmatpush1.msra.mxu0 0.0
      %516 = vmatprep.subr.mxu0 0.0
      %517 = vmatpush1.msra.mxu0 0.0
      %518 = vmatprep.mubr.f32.mxu0 0.0
      %519 = vmatmul.mubr.f32.gmra.mrb[0].mxu0 %v452
      %v520 = vpop.f32.mrb[0].mxu0
      %v521 = vadd.f32 %v368, %v520
      %v522 = vpop.f32.mrb[0].mxu0
      %v523 = vadd.f32 %v372, %v522
      %524 = vdwg.mxu0
      %v525 = vmax.f32 %v521, 0.0
      %v526 = vmax.f32 %v523, 0.0
      %v529 = vcombine.low %v449, %v450
      %vm531 = vcmask 1042432
      %vm532 = vcmask 784388
      %vm533 = vmor %vm532, %vm531
      %534 = vst.msk [vmem:[#allocation2] sm:$0x77] %vm533, %v529
      %v537 = vcombine.low %v525, %v526
      %s539 = scalar_lea.vmem [#allocation2], 8
      %540 = vst.msk [vmem:[%s539] sm:$0x77] %vm533, %v537
      %v541 = vrot.slane %v529, 5
      %v542 = vrot.slane %v541, 4
      %s544 = scalar_lea.vmem [#allocation2], 16
      %545 = vst.msk [vmem:[%s544] sm:$0x77] %vm533, %v542
      %v546 = vld [vmem:[%s4] sm:$0x1]
      %v548 = vlaneseq
      %v549 = vshrl.u32 %v548, 7
      %v550 = vsub.s32 0, %v549
      %v551 = vrot.slane %v546, %v550
      %v553 = vld [vmem:[#allocation2] sm:$0x7]
      %v554 = vld [vmem:[%s3] sm:$0xff]
      %v555 = vld [vmem:[%s3 + $0x8] sm:$0xff]
      %v556 = vld [vmem:[%s3 + $0x10] sm:$0xff]
      %v557 = vld [vmem:[%s3 + $0x18] sm:$0xff]
      %v558 = vld [vmem:[%s3 + $0x20] sm:$0xff]
      %v559 = vld [vmem:[%s3 + $0x28] sm:$0xff]
      %v560 = vld [vmem:[%s3 + $0x30] sm:$0xff]
      %v561 = vld [vmem:[%s3 + $0x38] sm:$0xff]
      %v562 = vld [vmem:[%s3 + $0x40] sm:$0xff]
      %v563 = vld [vmem:[%s3 + $0x48] sm:$0xff]
      %v564 = vld [vmem:[%s3 + $0x50] sm:$0xff]
      %v565 = vld [vmem:[%s3 + $0x58] sm:$0xff]
      %v566 = vld [vmem:[%s539] sm:$0x7]
      %s567 = scalar_lea.vmem %s3, 96
      %v568 = vld [vmem:[%s567] sm:$0xff]
      %v569 = vld [vmem:[%s567 + $0x8] sm:$0xff]
      %v570 = vld [vmem:[%s567 + $0x10] sm:$0xff]
      %v571 = vld [vmem:[%s567 + $0x18] sm:$0xff]
      %v572 = vld [vmem:[%s567 + $0x20] sm:$0xff]
      %v573 = vld [vmem:[%s567 + $0x28] sm:$0xff]
      %v574 = vld [vmem:[%s567 + $0x30] sm:$0xff]
      %v575 = vld [vmem:[%s567 + $0x38] sm:$0xff]
      %v576 = vld [vmem:[%s567 + $0x40] sm:$0xff]
      %v577 = vld [vmem:[%s567 + $0x48] sm:$0xff]
      %v578 = vld [vmem:[%s567 + $0x50] sm:$0xff]
      %v579 = vld [vmem:[%s567 + $0x58] sm:$0xff]
      %vm580 = vcmask 785408
      %v582 = vsel %vm580, %v566, 0
      %584 = vmatprep.subr.mxu0 0.0
      %585 = vmatpush1.msra.mxu0 %v568
      %586 = vmatprep.subr.mxu0 0.0
      %587 = vmatpush1.msra.mxu0 %v569
      %588 = vmatprep.subr.mxu0 0.0
      %589 = vmatpush1.msra.mxu0 %v570
      %590 = vmatprep.subr.mxu0 0.0
      %591 = vmatpush1.msra.mxu0 %v571
      %592 = vmatprep.subr.mxu0 0.0
      %593 = vmatpush1.msra.mxu0 %v572
      %594 = vmatprep.subr.mxu0 0.0
      %595 = vmatpush1.msra.mxu0 %v573
      %596 = vmatprep.subr.mxu0 0.0
      %597 = vmatpush1.msra.mxu0 %v574
      %598 = vmatprep.subr.mxu0 0.0
      %599 = vmatpush1.msra.mxu0 %v575
      %600 = vmatprep.subr.mxu0 0.0
      %601 = vmatpush1.msra.mxu0 %v576
      %602 = vmatprep.subr.mxu0 0.0
      %603 = vmatpush1.msra.mxu0 %v577
      %604 = vmatprep.subr.mxu0 0.0
      %605 = vmatpush1.msra.mxu0 %v578
      %606 = vmatprep.subr.mxu0 0.0
      %607 = vmatpush1.msra.mxu0 %v579
      %608 = vmatprep.subr.mxu0 0.0
      %609 = vmatpush1.msra.mxu0 0.0
      %610 = vmatprep.subr.mxu0 0.0
      %611 = vmatpush1.msra.mxu0 0.0
      %612 = vmatprep.subr.mxu0 0.0
      %613 = vmatpush1.msra.mxu0 0.0
      %614 = vmatprep.subr.mxu0 0.0
      %615 = vmatpush1.msra.mxu0 0.0
      %616 = vmatprep.subr.mxu0 0.0
      %617 = vmatpush1.msra.mxu0 0.0
      %618 = vmatprep.subr.mxu0 0.0
      %619 = vmatpush1.msra.mxu0 0.0
      %620 = vmatprep.subr.mxu0 0.0
      %621 = vmatpush1.msra.mxu0 0.0
      %622 = vmatprep.subr.mxu0 0.0
      %623 = vmatpush1.msra.mxu0 0.0
      %624 = vmatprep.subr.mxu0 0.0
      %625 = vmatpush1.msra.mxu0 0.0
      %626 = vmatprep.subr.mxu0 0.0
      %627 = vmatpush1.msra.mxu0 0.0
      %628 = vmatprep.subr.mxu0 0.0
      %629 = vmatpush1.msra.mxu0 0.0
      %630 = vmatprep.subr.mxu0 0.0
      %631 = vmatpush1.msra.mxu0 0.0
      %632 = vmatprep.subr.mxu0 0.0
      %633 = vmatpush1.msra.mxu0 0.0
      %634 = vmatprep.subr.mxu0 0.0
      %635 = vmatpush1.msra.mxu0 0.0
      %636 = vmatprep.subr.mxu0 0.0
      %637 = vmatpush1.msra.mxu0 0.0
      %638 = vmatprep.subr.mxu0 0.0
      %639 = vmatpush1.msra.mxu0 0.0
      %640 = vmatprep.subr.mxu0 0.0
      %641 = vmatpush1.msra.mxu0 0.0
      %642 = vmatprep.subr.mxu0 0.0
      %643 = vmatpush1.msra.mxu0 0.0
      %644 = vmatprep.subr.mxu0 0.0
      %645 = vmatpush1.msra.mxu0 0.0
      %646 = vmatprep.subr.mxu0 0.0
      %647 = vmatpush1.msra.mxu0 0.0
      %648 = vmatprep.mubr.f32.mxu0 0.0
      %649 = vmatmul.mubr.f32.gmra.mrb[0].mxu0 %v582
      %v650 = vpop.f32.mrb[0].mxu0
      %v651 = vadd.f32 0.0, %v650
      %v652 = vpop.f32.mrb[0].mxu0
      %653 = vdwg.mxu0
      %v655 = vsel %vm580, %v553, 0
      %657 = vmatprep.subr.mxu0 0.0
      %658 = vmatpush1.msra.mxu0 %v554
      %659 = vmatprep.subr.mxu0 0.0
      %660 = vmatpush1.msra.mxu0 %v555
      %661 = vmatprep.subr.mxu0 0.0
      %662 = vmatpush1.msra.mxu0 %v556
      %663 = vmatprep.subr.mxu0 0.0
      %664 = vmatpush1.msra.mxu0 %v557
      %665 = vmatprep.subr.mxu0 0.0
      %666 = vmatpush1.msra.mxu0 %v558
      %667 = vmatprep.subr.mxu0 0.0
      %668 = vmatpush1.msra.mxu0 %v559
      %669 = vmatprep.subr.mxu0 0.0
      %670 = vmatpush1.msra.mxu0 %v560
      %671 = vmatprep.subr.mxu0 0.0
      %672 = vmatpush1.msra.mxu0 %v561
      %673 = vmatprep.subr.mxu0 0.0
      %674 = vmatpush1.msra.mxu0 %v562
      %675 = vmatprep.subr.mxu0 0.0
      %676 = vmatpush1.msra.mxu0 %v563
      %677 = vmatprep.subr.mxu0 0.0
      %678 = vmatpush1.msra.mxu0 %v564
      %679 = vmatprep.subr.mxu0 0.0
      %680 = vmatpush1.msra.mxu0 %v565
      %681 = vmatprep.subr.mxu0 0.0
      %682 = vmatpush1.msra.mxu0 0.0
      %683 = vmatprep.subr.mxu0 0.0
      %684 = vmatpush1.msra.mxu0 0.0
      %685 = vmatprep.subr.mxu0 0.0
      %686 = vmatpush1.msra.mxu0 0.0
      %687 = vmatprep.subr.mxu0 0.0
      %688 = vmatpush1.msra.mxu0 0.0
      %689 = vmatprep.subr.mxu0 0.0
      %690 = vmatpush1.msra.mxu0 0.0
      %691 = vmatprep.subr.mxu0 0.0
      %692 = vmatpush1.msra.mxu0 0.0
      %693 = vmatprep.subr.mxu0 0.0
      %694 = vmatpush1.msra.mxu0 0.0
      %695 = vmatprep.subr.mxu0 0.0
      %696 = vmatpush1.msra.mxu0 0.0
      %697 = vmatprep.subr.mxu0 0.0
      %698 = vmatpush1.msra.mxu0 0.0
      %699 = vmatprep.subr.mxu0 0.0
      %700 = vmatpush1.msra.mxu0 0.0
      %701 = vmatprep.subr.mxu0 0.0
      %702 = vmatpush1.msra.mxu0 0.0
      %703 = vmatprep.subr.mxu0 0.0
      %704 = vmatpush1.msra.mxu0 0.0
      %705 = vmatprep.subr.mxu0 0.0
      %706 = vmatpush1.msra.mxu0 0.0
      %707 = vmatprep.subr.mxu0 0.0
      %708 = vmatpush1.msra.mxu0 0.0
      %709 = vmatprep.subr.mxu0 0.0
      %710 = vmatpush1.msra.mxu0 0.0
      %711 = vmatprep.subr.mxu0 0.0
      %712 = vmatpush1.msra.mxu0 0.0
      %713 = vmatprep.subr.mxu0 0.0
      %714 = vmatpush1.msra.mxu0 0.0
      %715 = vmatprep.subr.mxu0 0.0
      %716 = vmatpush1.msra.mxu0 0.0
      %717 = vmatprep.subr.mxu0 0.0
      %718 = vmatpush1.msra.mxu0 0.0
      %719 = vmatprep.subr.mxu0 0.0
      %720 = vmatpush1.msra.mxu0 0.0
      %721 = vmatprep.mubr.f32.mxu0 0.0
      %722 = vmatmul.mubr.f32.gmra.mrb[0].mxu0 %v655
      %v723 = vpop.f32.mrb[0].mxu0
      %v724 = vadd.f32 %v651, %v723
      %v725 = vpop.f32.mrb[0].mxu0
      %726 = vdwg.mxu0
      %v727 = vld [vmem:[%s544] sm:$0x7]
      %s728 = scalar_lea.vmem %s3, 192
      %v729 = vld [vmem:[%s728] sm:$0xff]
      %v730 = vld [vmem:[%s728 + $0x8] sm:$0xff]
      %v731 = vld [vmem:[%s728 + $0x10] sm:$0xff]
      %v732 = vld [vmem:[%s728 + $0x18] sm:$0xff]
      %v733 = vld [vmem:[%s728 + $0x20] sm:$0xff]
      %v734 = vld [vmem:[%s728 + $0x28] sm:$0xff]
      %v735 = vld [vmem:[%s728 + $0x30] sm:$0xff]
      %v736 = vld [vmem:[%s728 + $0x38] sm:$0xff]
      %v737 = vld [vmem:[%s728 + $0x40] sm:$0xff]
      %v738 = vld [vmem:[%s728 + $0x48] sm:$0xff]
      %v739 = vld [vmem:[%s728 + $0x50] sm:$0xff]
      %v740 = vld [vmem:[%s728 + $0x58] sm:$0xff]
      %v742 = vsel %vm580, %v727, 0
      %744 = vmatprep.subr.mxu0 0.0
      %745 = vmatpush1.msra.mxu0 %v729
      %746 = vmatprep.subr.mxu0 0.0
      %747 = vmatpush1.msra.mxu0 %v730
      %748 = vmatprep.subr.mxu0 0.0
      %749 = vmatpush1.msra.mxu0 %v731
      %750 = vmatprep.subr.mxu0 0.0
      %751 = vmatpush1.msra.mxu0 %v732
      %752 = vmatprep.subr.mxu0 0.0
      %753 = vmatpush1.msra.mxu0 %v733
      %754 = vmatprep.subr.mxu0 0.0
      %755 = vmatpush1.msra.mxu0 %v734
      %756 = vmatprep.subr.mxu0 0.0
      %757 = vmatpush1.msra.mxu0 %v735
      %758 = vmatprep.subr.mxu0 0.0
      %759 = vmatpush1.msra.mxu0 %v736
      %760 = vmatprep.subr.mxu0 0.0
      %761 = vmatpush1.msra.mxu0 %v737
      %762 = vmatprep.subr.mxu0 0.0
      %763 = vmatpush1.msra.mxu0 %v738
      %764 = vmatprep.subr.mxu0 0.0
      %765 = vmatpush1.msra.mxu0 %v739
      %766 = vmatprep.subr.mxu0 0.0
      %767 = vmatpush1.msra.mxu0 %v740
      %768 = vmatprep.subr.mxu0 0.0
      %769 = vmatpush1.msra.mxu0 0.0
      %770 = vmatprep.subr.mxu0 0.0
      %771 = vmatpush1.msra.mxu0 0.0
      %772 = vmatprep.subr.mxu0 0.0
      %773 = vmatpush1.msra.mxu0 0.0
      %774 = vmatprep.subr.mxu0 0.0
      %775 = vmatpush1.msra.mxu0 0.0
      %776 = vmatprep.subr.mxu0 0.0
      %777 = vmatpush1.msra.mxu0 0.0
      %778 = vmatprep.subr.mxu0 0.0
      %779 = vmatpush1.msra.mxu0 0.0
      %780 = vmatprep.subr.mxu0 0.0
      %781 = vmatpush1.msra.mxu0 0.0
      %782 = vmatprep.subr.mxu0 0.0
      %783 = vmatpush1.msra.mxu0 0.0
      %784 = vmatprep.subr.mxu0 0.0
      %785 = vmatpush1.msra.mxu0 0.0
      %786 = vmatprep.subr.mxu0 0.0
      %787 = vmatpush1.msra.mxu0 0.0
      %788 = vmatprep.subr.mxu0 0.0
      %789 = vmatpush1.msra.mxu0 0.0
      %790 = vmatprep.subr.mxu0 0.0
      %791 = vmatpush1.msra.mxu0 0.0
      %792 = vmatprep.subr.mxu0 0.0
      %793 = vmatpush1.msra.mxu0 0.0
      %794 = vmatprep.subr.mxu0 0.0
      %795 = vmatpush1.msra.mxu0 0.0
      %796 = vmatprep.subr.mxu0 0.0
      %797 = vmatpush1.msra.mxu0 0.0
      %798 = vmatprep.subr.mxu0 0.0
      %799 = vmatpush1.msra.mxu0 0.0
      %800 = vmatprep.subr.mxu0 0.0
      %801 = vmatpush1.msra.mxu0 0.0
      %802 = vmatprep.subr.mxu0 0.0
      %803 = vmatpush1.msra.mxu0 0.0
      %804 = vmatprep.subr.mxu0 0.0
      %805 = vmatpush1.msra.mxu0 0.0
      %806 = vmatprep.subr.mxu0 0.0
      %807 = vmatpush1.msra.mxu0 0.0
      %808 = vmatprep.mubr.f32.mxu0 0.0
      %809 = vmatmul.mubr.f32.gmra.mrb[0].mxu0 %v742
      %v810 = vpop.f32.mrb[0].mxu0
      %v811 = vadd.f32 0.0, %v810
      %v812 = vpop.f32.mrb[0].mxu0
      %813 = vdwg.mxu0
      %v814 = vadd.f32 %v724, %v811
      %v815 = vadd.f32 %v814, %v551
      %v816 = vmax.f32 %v815, 0.0
      %vm817 = vcmask 256000
      %818 = vst.msk [vmem:[#allocation3] sm:$0x7] %vm817, %v816
      %v819 = vld [vmem:[#allocation2] sm:$0x77]
      %v820 = vld [vmem:[%s3] sm:$0xff]
      %v821 = vld [vmem:[%s3 + $0x8] sm:$0xff]
      %v822 = vld [vmem:[%s3 + $0x10] sm:$0xff]
      %v823 = vld [vmem:[%s3 + $0x18] sm:$0xff]
      %v824 = vld [vmem:[%s3 + $0x20] sm:$0xff]
      %v825 = vld [vmem:[%s3 + $0x28] sm:$0xff]
      %v826 = vld [vmem:[%s3 + $0x30] sm:$0xff]
      %v827 = vld [vmem:[%s3 + $0x38] sm:$0xff]
      %v828 = vld [vmem:[%s3 + $0x40] sm:$0xff]
      %v829 = vld [vmem:[%s3 + $0x48] sm:$0xff]
      %v830 = vld [vmem:[%s3 + $0x50] sm:$0xff]
      %v831 = vld [vmem:[%s3 + $0x58] sm:$0xff]
      %v832 = vld [vmem:[%s539] sm:$0x77]
      %v833 = vld [vmem:[%s567] sm:$0xff]
      %v834 = vld [vmem:[%s567 + $0x8] sm:$0xff]
      %v835 = vld [vmem:[%s567 + $0x10] sm:$0xff]
      %v836 = vld [vmem:[%s567 + $0x18] sm:$0xff]
      %v837 = vld [vmem:[%s567 + $0x20] sm:$0xff]
      %v838 = vld [vmem:[%s567 + $0x28] sm:$0xff]
      %v839 = vld [vmem:[%s567 + $0x30] sm:$0xff]
      %v840 = vld [vmem:[%s567 + $0x38] sm:$0xff]
      %v841 = vld [vmem:[%s567 + $0x40] sm:$0xff]
      %v842 = vld [vmem:[%s567 + $0x48] sm:$0xff]
      %v843 = vld [vmem:[%s567 + $0x50] sm:$0xff]
      %v844 = vld [vmem:[%s567 + $0x58] sm:$0xff]
      %v846 = vcombine.high %v832, %v832
      %847 = vrot.lane.b32.xlu0 %v832, 64
      %v848 = vpop.permute.xlu0 %847
      %849 = vrot.lane.b32.xlu0 %v846, 64
      %v850 = vpop.permute.xlu0 %849
      %vm851 = vcmask 523264
      %v852 = vsel %vm851, %v848, %v850
      %v853 = vsel %vm580, %v852, 0
      %855 = vmatprep.subr.mxu0 0.0
      %856 = vmatpush1.msra.mxu0 %v833
      %857 = vmatprep.subr.mxu0 0.0
      %858 = vmatpush1.msra.mxu0 %v834
      %859 = vmatprep.subr.mxu0 0.0
      %860 = vmatpush1.msra.mxu0 %v835
      %861 = vmatprep.subr.mxu0 0.0
      %862 = vmatpush1.msra.mxu0 %v836
      %863 = vmatprep.subr.mxu0 0.0
      %864 = vmatpush1.msra.mxu0 %v837
      %865 = vmatprep.subr.mxu0 0.0
      %866 = vmatpush1.msra.mxu0 %v838
      %867 = vmatprep.subr.mxu0 0.0
      %868 = vmatpush1.msra.mxu0 %v839
      %869 = vmatprep.subr.mxu0 0.0
      %870 = vmatpush1.msra.mxu0 %v840
      %871 = vmatprep.subr.mxu0 0.0
      %872 = vmatpush1.msra.mxu0 %v841
      %873 = vmatprep.subr.mxu0 0.0
      %874 = vmatpush1.msra.mxu0 %v842
      %875 = vmatprep.subr.mxu0 0.0
      %876 = vmatpush1.msra.mxu0 %v843
      %877 = vmatprep.subr.mxu0 0.0
      %878 = vmatpush1.msra.mxu0 %v844
      %879 = vmatprep.subr.mxu0 0.0
      %880 = vmatpush1.msra.mxu0 0.0
      %881 = vmatprep.subr.mxu0 0.0
      %882 = vmatpush1.msra.mxu0 0.0
      %883 = vmatprep.subr.mxu0 0.0
      %884 = vmatpush1.msra.mxu0 0.0
      %885 = vmatprep.subr.mxu0 0.0
      %886 = vmatpush1.msra.mxu0 0.0
      %887 = vmatprep.subr.mxu0 0.0
      %888 = vmatpush1.msra.mxu0 0.0
      %889 = vmatprep.subr.mxu0 0.0
      %890 = vmatpush1.msra.mxu0 0.0
      %891 = vmatprep.subr.mxu0 0.0
      %892 = vmatpush1.msra.mxu0 0.0
      %893 = vmatprep.subr.mxu0 0.0
      %894 = vmatpush1.msra.mxu0 0.0
      %895 = vmatprep.subr.mxu0 0.0
      %896 = vmatpush1.msra.mxu0 0.0
      %897 = vmatprep.subr.mxu0 0.0
      %898 = vmatpush1.msra.mxu0 0.0
      %899 = vmatprep.subr.mxu0 0.0
      %900 = vmatpush1.msra.mxu0 0.0
      %901 = vmatprep.subr.mxu0 0.0
      %902 = vmatpush1.msra.mxu0 0.0
      %903 = vmatprep.subr.mxu0 0.0
      %904 = vmatpush1.msra.mxu0 0.0
      %905 = vmatprep.subr.mxu0 0.0
      %906 = vmatpush1.msra.mxu0 0.0
      %907 = vmatprep.subr.mxu0 0.0
      %908 = vmatpush1.msra.mxu0 0.0
      %909 = vmatprep.subr.mxu0 0.0
      %910 = vmatpush1.msra.mxu0 0.0
      %911 = vmatprep.subr.mxu0 0.0
      %912 = vmatpush1.msra.mxu0 0.0
      %913 = vmatprep.subr.mxu0 0.0
      %914 = vmatpush1.msra.mxu0 0.0
      %915 = vmatprep.subr.mxu0 0.0
      %916 = vmatpush1.msra.mxu0 0.0
      %917 = vmatprep.subr.mxu0 0.0
      %918 = vmatpush1.msra.mxu0 0.0
      %919 = vmatprep.mubr.f32.mxu0 0.0
      %920 = vmatmul.mubr.f32.gmra.mrb[0].mxu0 %v853
      %v921 = vpop.f32.mrb[0].mxu0
      %v922 = vadd.f32 0.0, %v921
      %v923 = vpop.f32.mrb[0].mxu0
      %924 = vdwg.mxu0
      %v926 = vcombine.high %v819, %v819
      %927 = vrot.lane.b32.xlu0 %v819, 64
      %v928 = vpop.permute.xlu0 %927
      %929 = vrot.lane.b32.xlu0 %v926, 64
      %v930 = vpop.permute.xlu0 %929
      %v931 = vsel %vm851, %v928, %v930
      %v932 = vsel %vm580, %v931, 0
      %934 = vmatprep.subr.mxu0 0.0
      %935 = vmatpush1.msra.mxu0 %v820
      %936 = vmatprep.subr.mxu0 0.0
      %937 = vmatpush1.msra.mxu0 %v821
      %938 = vmatprep.subr.mxu0 0.0
      %939 = vmatpush1.msra.mxu0 %v822
      %940 = vmatprep.subr.mxu0 0.0
      %941 = vmatpush1.msra.mxu0 %v823
      %942 = vmatprep.subr.mxu0 0.0
      %943 = vmatpush1.msra.mxu0 %v824
      %944 = vmatprep.subr.mxu0 0.0
      %945 = vmatpush1.msra.mxu0 %v825
      %946 = vmatprep.subr.mxu0 0.0
      %947 = vmatpush1.msra.mxu0 %v826
      %948 = vmatprep.subr.mxu0 0.0
      %949 = vmatpush1.msra.mxu0 %v827
      %950 = vmatprep.subr.mxu0 0.0
      %951 = vmatpush1.msra.mxu0 %v828
      %952 = vmatprep.subr.mxu0 0.0
      %953 = vmatpush1.msra.mxu0 %v829
      %954 = vmatprep.subr.mxu0 0.0
      %955 = vmatpush1.msra.mxu0 %v830
      %956 = vmatprep.subr.mxu0 0.0
      %957 = vmatpush1.msra.mxu0 %v831
      %958 = vmatprep.subr.mxu0 0.0
      %959 = vmatpush1.msra.mxu0 0.0
      %960 = vmatprep.subr.mxu0 0.0
      %961 = vmatpush1.msra.mxu0 0.0
      %962 = vmatprep.subr.mxu0 0.0
      %963 = vmatpush1.msra.mxu0 0.0
      %964 = vmatprep.subr.mxu0 0.0
      %965 = vmatpush1.msra.mxu0 0.0
      %966 = vmatprep.subr.mxu0 0.0
      %967 = vmatpush1.msra.mxu0 0.0
      %968 = vmatprep.subr.mxu0 0.0
      %969 = vmatpush1.msra.mxu0 0.0
      %970 = vmatprep.subr.mxu0 0.0
      %971 = vmatpush1.msra.mxu0 0.0
      %972 = vmatprep.subr.mxu0 0.0
      %973 = vmatpush1.msra.mxu0 0.0
      %974 = vmatprep.subr.mxu0 0.0
      %975 = vmatpush1.msra.mxu0 0.0
      %976 = vmatprep.subr.mxu0 0.0
      %977 = vmatpush1.msra.mxu0 0.0
      %978 = vmatprep.subr.mxu0 0.0
      %979 = vmatpush1.msra.mxu0 0.0
      %980 = vmatprep.subr.mxu0 0.0
      %981 = vmatpush1.msra.mxu0 0.0
      %982 = vmatprep.subr.mxu0 0.0
      %983 = vmatpush1.msra.mxu0 0.0
      %984 = vmatprep.subr.mxu0 0.0
      %985 = vmatpush1.msra.mxu0 0.0
      %986 = vmatprep.subr.mxu0 0.0
      %987 = vmatpush1.msra.mxu0 0.0
      %988 = vmatprep.subr.mxu0 0.0
      %989 = vmatpush1.msra.mxu0 0.0
      %990 = vmatprep.subr.mxu0 0.0
      %991 = vmatpush1.msra.mxu0 0.0
      %992 = vmatprep.subr.mxu0 0.0
      %993 = vmatpush1.msra.mxu0 0.0
      %994 = vmatprep.subr.mxu0 0.0
      %995 = vmatpush1.msra.mxu0 0.0
      %996 = vmatprep.subr.mxu0 0.0
      %997 = vmatpush1.msra.mxu0 0.0
      %998 = vmatprep.mubr.f32.mxu0 0.0
      %999 = vmatmul.mubr.f32.gmra.mrb[0].mxu0 %v932
      %v1000 = vpop.f32.mrb[0].mxu0
      %v1001 = vadd.f32 %v922, %v1000
      %v1002 = vpop.f32.mrb[0].mxu0
      %1003 = vdwg.mxu0
      %v1004 = vld [vmem:[%s544] sm:$0x77]
      %v1005 = vld [vmem:[%s728] sm:$0xff]
      %v1006 = vld [vmem:[%s728 + $0x8] sm:$0xff]
      %v1007 = vld [vmem:[%s728 + $0x10] sm:$0xff]
      %v1008 = vld [vmem:[%s728 + $0x18] sm:$0xff]
      %v1009 = vld [vmem:[%s728 + $0x20] sm:$0xff]
      %v1010 = vld [vmem:[%s728 + $0x28] sm:$0xff]
      %v1011 = vld [vmem:[%s728 + $0x30] sm:$0xff]
      %v1012 = vld [vmem:[%s728 + $0x38] sm:$0xff]
      %v1013 = vld [vmem:[%s728 + $0x40] sm:$0xff]
      %v1014 = vld [vmem:[%s728 + $0x48] sm:$0xff]
      %v1015 = vld [vmem:[%s728 + $0x50] sm:$0xff]
      %v1016 = vld [vmem:[%s728 + $0x58] sm:$0xff]
      %v1018 = vcombine.high %v1004, %v1004
      %1019 = vrot.lane.b32.xlu0 %v1004, 64
      %v1020 = vpop.permute.xlu0 %1019
      %1021 = vrot.lane.b32.xlu0 %v1018, 64
      %v1022 = vpop.permute.xlu0 %1021
      %v1023 = vsel %vm851, %v1020, %v1022
      %v1024 = vsel %vm580, %v1023, 0
      %1026 = vmatprep.subr.mxu0 0.0
      %1027 = vmatpush1.msra.mxu0 %v1005
      %1028 = vmatprep.subr.mxu0 0.0
      %1029 = vmatpush1.msra.mxu0 %v1006
      %1030 = vmatprep.subr.mxu0 0.0
      %1031 = vmatpush1.msra.mxu0 %v1007
      %1032 = vmatprep.subr.mxu0 0.0
      %1033 = vmatpush1.msra.mxu0 %v1008
      %1034 = vmatprep.subr.mxu0 0.0
      %1035 = vmatpush1.msra.mxu0 %v1009
      %1036 = vmatprep.subr.mxu0 0.0
      %1037 = vmatpush1.msra.mxu0 %v1010
      %1038 = vmatprep.subr.mxu0 0.0
      %1039 = vmatpush1.msra.mxu0 %v1011
      %1040 = vmatprep.subr.mxu0 0.0
      %1041 = vmatpush1.msra.mxu0 %v1012
      %1042 = vmatprep.subr.mxu0 0.0
      %1043 = vmatpush1.msra.mxu0 %v1013
      %1044 = vmatprep.subr.mxu0 0.0
      %1045 = vmatpush1.msra.mxu0 %v1014
      %1046 = vmatprep.subr.mxu0 0.0
      %1047 = vmatpush1.msra.mxu0 %v1015
      %1048 = vmatprep.subr.mxu0 0.0
      %1049 = vmatpush1.msra.mxu0 %v1016
      %1050 = vmatprep.subr.mxu0 0.0
      %1051 = vmatpush1.msra.mxu0 0.0
      %1052 = vmatprep.subr.mxu0 0.0
      %1053 = vmatpush1.msra.mxu0 0.0
      %1054 = vmatprep.subr.mxu0 0.0
      %1055 = vmatpush1.msra.mxu0 0.0
      %1056 = vmatprep.subr.mxu0 0.0
      %1057 = vmatpush1.msra.mxu0 0.0
      %1058 = vmatprep.subr.mxu0 0.0
      %1059 = vmatpush1.msra.mxu0 0.0
      %1060 = vmatprep.subr.mxu0 0.0
      %1061 = vmatpush1.msra.mxu0 0.0
      %1062 = vmatprep.subr.mxu0 0.0
      %1063 = vmatpush1.msra.mxu0 0.0
      %1064 = vmatprep.subr.mxu0 0.0
      %1065 = vmatpush1.msra.mxu0 0.0
      %1066 = vmatprep.subr.mxu0 0.0
      %1067 = vmatpush1.msra.mxu0 0.0
      %1068 = vmatprep.subr.mxu0 0.0
      %1069 = vmatpush1.msra.mxu0 0.0
      %1070 = vmatprep.subr.mxu0 0.0
      %1071 = vmatpush1.msra.mxu0 0.0
      %1072 = vmatprep.subr.mxu0 0.0
      %1073 = vmatpush1.msra.mxu0 0.0
      %1074 = vmatprep.subr.mxu0 0.0
      %1075 = vmatpush1.msra.mxu0 0.0
      %1076 = vmatprep.subr.mxu0 0.0
      %1077 = vmatpush1.msra.mxu0 0.0
      %1078 = vmatprep.subr.mxu0 0.0
      %1079 = vmatpush1.msra.mxu0 0.0
      %1080 = vmatprep.subr.mxu0 0.0
      %1081 = vmatpush1.msra.mxu0 0.0
      %1082 = vmatprep.subr.mxu0 0.0
      %1083 = vmatpush1.msra.mxu0 0.0
      %1084 = vmatprep.subr.mxu0 0.0
      %1085 = vmatpush1.msra.mxu0 0.0
      %1086 = vmatprep.subr.mxu0 0.0
      %1087 = vmatpush1.msra.mxu0 0.0
      %1088 = vmatprep.subr.mxu0 0.0
      %1089 = vmatpush1.msra.mxu0 0.0
      %1090 = vmatprep.mubr.f32.mxu0 0.0
      %1091 = vmatmul.mubr.f32.gmra.mrb[0].mxu0 %v1024
      %v1092 = vpop.f32.mrb[0].mxu0
      %v1093 = vadd.f32 0.0, %v1092
      %v1094 = vpop.f32.mrb[0].mxu0
      %1095 = vdwg.mxu0
      %v1096 = vadd.f32 %v1001, %v1093
      %v1097 = vadd.f32 %v1096, %v551
      %v1098 = vmax.f32 %v1097, 0.0
      %1100 = vrot.lane.b32.xlu0 %v1098, 32
      %v1101 = vpop.permute.xlu0 %1100
      %vm1103 = vcmask 518400
      %1104 = vst.msk [vmem:[#allocation3] sm:$0x7] %vm1103, %v1101
      %v1105 = vld [vmem:[#allocation2 + $0x4] sm:$0x7]
      %v1106 = vld [vmem:[%s3] sm:$0xff]
      %v1107 = vld [vmem:[%s3 + $0x8] sm:$0xff]
      %v1108 = vld [vmem:[%s3 + $0x10] sm:$0xff]
      %v1109 = vld [vmem:[%s3 + $0x18] sm:$0xff]
      %v1110 = vld [vmem:[%s3 + $0x20] sm:$0xff]
      %v1111 = vld [vmem:[%s3 + $0x28] sm:$0xff]
      %v1112 = vld [vmem:[%s3 + $0x30] sm:$0xff]
      %v1113 = vld [vmem:[%s3 + $0x38] sm:$0xff]
      %v1114 = vld [vmem:[%s3 + $0x40] sm:$0xff]
      %v1115 = vld [vmem:[%s3 + $0x48] sm:$0xff]
      %v1116 = vld [vmem:[%s3 + $0x50] sm:$0xff]
      %v1117 = vld [vmem:[%s3 + $0x58] sm:$0xff]
      %v1118 = vld [vmem:[%s539 + $0x4] sm:$0x7]
      %v1119 = vld [vmem:[%s567] sm:$0xff]
      %v1120 = vld [vmem:[%s567 + $0x8] sm:$0xff]
      %v1121 = vld [vmem:[%s567 + $0x10] sm:$0xff]
      %v1122 = vld [vmem:[%s567 + $0x18] sm:$0xff]
      %v1123 = vld [vmem:[%s567 + $0x20] sm:$0xff]
      %v1124 = vld [vmem:[%s567 + $0x28] sm:$0xff]
      %v1125 = vld [vmem:[%s567 + $0x30] sm:$0xff]
      %v1126 = vld [vmem:[%s567 + $0x38] sm:$0xff]
      %v1127 = vld [vmem:[%s567 + $0x40] sm:$0xff]
      %v1128 = vld [vmem:[%s567 + $0x48] sm:$0xff]
      %v1129 = vld [vmem:[%s567 + $0x50] sm:$0xff]
      %v1130 = vld [vmem:[%s567 + $0x58] sm:$0xff]
      %v1132 = vsel %vm580, %v1118, 0
      %1134 = vmatprep.subr.mxu0 0.0
      %1135 = vmatpush1.msra.mxu0 %v1119
      %1136 = vmatprep.subr.mxu0 0.0
      %1137 = vmatpush1.msra.mxu0 %v1120
      %1138 = vmatprep.subr.mxu0 0.0
      %1139 = vmatpush1.msra.mxu0 %v1121
      %1140 = vmatprep.subr.mxu0 0.0
      %1141 = vmatpush1.msra.mxu0 %v1122
      %1142 = vmatprep.subr.mxu0 0.0
      %1143 = vmatpush1.msra.mxu0 %v1123
      %1144 = vmatprep.subr.mxu0 0.0
      %1145 = vmatpush1.msra.mxu0 %v1124
      %1146 = vmatprep.subr.mxu0 0.0
      %1147 = vmatpush1.msra.mxu0 %v1125
      %1148 = vmatprep.subr.mxu0 0.0
      %1149 = vmatpush1.msra.mxu0 %v1126
      %1150 = vmatprep.subr.mxu0 0.0
      %1151 = vmatpush1.msra.mxu0 %v1127
      %1152 = vmatprep.subr.mxu0 0.0
      %1153 = vmatpush1.msra.mxu0 %v1128
      %1154 = vmatprep.subr.mxu0 0.0
      %1155 = vmatpush1.msra.mxu0 %v1129
      %1156 = vmatprep.subr.mxu0 0.0
      %1157 = vmatpush1.msra.mxu0 %v1130
      %1158 = vmatprep.subr.mxu0 0.0
      %1159 = vmatpush1.msra.mxu0 0.0
      %1160 = vmatprep.subr.mxu0 0.0
      %1161 = vmatpush1.msra.mxu0 0.0
      %1162 = vmatprep.subr.mxu0 0.0
      %1163 = vmatpush1.msra.mxu0 0.0
      %1164 = vmatprep.subr.mxu0 0.0
      %1165 = vmatpush1.msra.mxu0 0.0
      %1166 = vmatprep.subr.mxu0 0.0
      %1167 = vmatpush1.msra.mxu0 0.0
      %1168 = vmatprep.subr.mxu0 0.0
      %1169 = vmatpush1.msra.mxu0 0.0
      %1170 = vmatprep.subr.mxu0 0.0
      %1171 = vmatpush1.msra.mxu0 0.0
      %1172 = vmatprep.subr.mxu0 0.0
      %1173 = vmatpush1.msra.mxu0 0.0
      %1174 = vmatprep.subr.mxu0 0.0
      %1175 = vmatpush1.msra.mxu0 0.0
      %1176 = vmatprep.subr.mxu0 0.0
      %1177 = vmatpush1.msra.mxu0 0.0
      %1178 = vmatprep.subr.mxu0 0.0
      %1179 = vmatpush1.msra.mxu0 0.0
      %1180 = vmatprep.subr.mxu0 0.0
      %1181 = vmatpush1.msra.mxu0 0.0
      %1182 = vmatprep.subr.mxu0 0.0
      %1183 = vmatpush1.msra.mxu0 0.0
      %1184 = vmatprep.subr.mxu0 0.0
      %1185 = vmatpush1.msra.mxu0 0.0
      %1186 = vmatprep.subr.mxu0 0.0
      %1187 = vmatpush1.msra.mxu0 0.0
      %1188 = vmatprep.subr.mxu0 0.0
      %1189 = vmatpush1.msra.mxu0 0.0
      %1190 = vmatprep.subr.mxu0 0.0
      %1191 = vmatpush1.msra.mxu0 0.0
      %1192 = vmatprep.subr.mxu0 0.0
      %1193 = vmatpush1.msra.mxu0 0.0
      %1194 = vmatprep.subr.mxu0 0.0
      %1195 = vmatpush1.msra.mxu0 0.0
      %1196 = vmatprep.subr.mxu0 0.0
      %1197 = vmatpush1.msra.mxu0 0.0
      %1198 = vmatprep.mubr.f32.mxu0 0.0
      %1199 = vmatmul.mubr.f32.gmra.mrb[0].mxu0 %v1132
      %v1200 = vpop.f32.mrb[0].mxu0
      %v1201 = vadd.f32 0.0, %v1200
      %v1202 = vpop.f32.mrb[0].mxu0
      %1203 = vdwg.mxu0
      %v1205 = vsel %vm580, %v1105, 0
      %1207 = vmatprep.subr.mxu0 0.0
      %1208 = vmatpush1.msra.mxu0 %v1106
      %1209 = vmatprep.subr.mxu0 0.0
      %1210 = vmatpush1.msra.mxu0 %v1107
      %1211 = vmatprep.subr.mxu0 0.0
      %1212 = vmatpush1.msra.mxu0 %v1108
      %1213 = vmatprep.subr.mxu0 0.0
      %1214 = vmatpush1.msra.mxu0 %v1109
      %1215 = vmatprep.subr.mxu0 0.0
      %1216 = vmatpush1.msra.mxu0 %v1110
      %1217 = vmatprep.subr.mxu0 0.0
      %1218 = vmatpush1.msra.mxu0 %v1111
      %1219 = vmatprep.subr.mxu0 0.0
      %1220 = vmatpush1.msra.mxu0 %v1112
      %1221 = vmatprep.subr.mxu0 0.0
      %1222 = vmatpush1.msra.mxu0 %v1113
      %1223 = vmatprep.subr.mxu0 0.0
      %1224 = vmatpush1.msra.mxu0 %v1114
      %1225 = vmatprep.subr.mxu0 0.0
      %1226 = vmatpush1.msra.mxu0 %v1115
      %1227 = vmatprep.subr.mxu0 0.0
      %1228 = vmatpush1.msra.mxu0 %v1116
      %1229 = vmatprep.subr.mxu0 0.0
      %1230 = vmatpush1.msra.mxu0 %v1117
      %1231 = vmatprep.subr.mxu0 0.0
      %1232 = vmatpush1.msra.mxu0 0.0
      %1233 = vmatprep.subr.mxu0 0.0
      %1234 = vmatpush1.msra.mxu0 0.0
      %1235 = vmatprep.subr.mxu0 0.0
      %1236 = vmatpush1.msra.mxu0 0.0
      %1237 = vmatprep.subr.mxu0 0.0
      %1238 = vmatpush1.msra.mxu0 0.0
      %1239 = vmatprep.subr.mxu0 0.0
      %1240 = vmatpush1.msra.mxu0 0.0
      %1241 = vmatprep.subr.mxu0 0.0
      %1242 = vmatpush1.msra.mxu0 0.0
      %1243 = vmatprep.subr.mxu0 0.0
      %1244 = vmatpush1.msra.mxu0 0.0
      %1245 = vmatprep.subr.mxu0 0.0
      %1246 = vmatpush1.msra.mxu0 0.0
      %1247 = vmatprep.subr.mxu0 0.0
      %1248 = vmatpush1.msra.mxu0 0.0
      %1249 = vmatprep.subr.mxu0 0.0
      %1250 = vmatpush1.msra.mxu0 0.0
      %1251 = vmatprep.subr.mxu0 0.0
      %1252 = vmatpush1.msra.mxu0 0.0
      %1253 = vmatprep.subr.mxu0 0.0
      %1254 = vmatpush1.msra.mxu0 0.0
      %1255 = vmatprep.subr.mxu0 0.0
      %1256 = vmatpush1.msra.mxu0 0.0
      %1257 = vmatprep.subr.mxu0 0.0
      %1258 = vmatpush1.msra.mxu0 0.0
      %1259 = vmatprep.subr.mxu0 0.0
      %1260 = vmatpush1.msra.mxu0 0.0
      %1261 = vmatprep.subr.mxu0 0.0
      %1262 = vmatpush1.msra.mxu0 0.0
      %1263 = vmatprep.subr.mxu0 0.0
      %1264 = vmatpush1.msra.mxu0 0.0
      %1265 = vmatprep.subr.mxu0 0.0
      %1266 = vmatpush1.msra.mxu0 0.0
      %1267 = vmatprep.subr.mxu0 0.0
      %1268 = vmatpush1.msra.mxu0 0.0
      %1269 = vmatprep.subr.mxu0 0.0
      %1270 = vmatpush1.msra.mxu0 0.0
      %1271 = vmatprep.mubr.f32.mxu0 0.0
      %1272 = vmatmul.mubr.f32.gmra.mrb[0].mxu0 %v1205
      %v1273 = vpop.f32.mrb[0].mxu0
      %v1274 = vadd.f32 %v1201, %v1273
      %v1275 = vpop.f32.mrb[0].mxu0
      %1276 = vdwg.mxu0
      %v1277 = vld [vmem:[%s544 + $0x4] sm:$0x7]
      %v1278 = vld [vmem:[%s728] sm:$0xff]
      %v1279 = vld [vmem:[%s728 + $0x8] sm:$0xff]
      %v1280 = vld [vmem:[%s728 + $0x10] sm:$0xff]
      %v1281 = vld [vmem:[%s728 + $0x18] sm:$0xff]
      %v1282 = vld [vmem:[%s728 + $0x20] sm:$0xff]
      %v1283 = vld [vmem:[%s728 + $0x28] sm:$0xff]
      %v1284 = vld [vmem:[%s728 + $0x30] sm:$0xff]
      %v1285 = vld [vmem:[%s728 + $0x38] sm:$0xff]
      %v1286 = vld [vmem:[%s728 + $0x40] sm:$0xff]
      %v1287 = vld [vmem:[%s728 + $0x48] sm:$0xff]
      %v1288 = vld [vmem:[%s728 + $0x50] sm:$0xff]
      %v1289 = vld [vmem:[%s728 + $0x58] sm:$0xff]
      %v1291 = vsel %vm580, %v1277, 0
      %1293 = vmatprep.subr.mxu0 0.0
      %1294 = vmatpush1.msra.mxu0 %v1278
      %1295 = vmatprep.subr.mxu0 0.0
      %1296 = vmatpush1.msra.mxu0 %v1279
      %1297 = vmatprep.subr.mxu0 0.0
      %1298 = vmatpush1.msra.mxu0 %v1280
      %1299 = vmatprep.subr.mxu0 0.0
      %1300 = vmatpush1.msra.mxu0 %v1281
      %1301 = vmatprep.subr.mxu0 0.0
      %1302 = vmatpush1.msra.mxu0 %v1282
      %1303 = vmatprep.subr.mxu0 0.0
      %1304 = vmatpush1.msra.mxu0 %v1283
      %1305 = vmatprep.subr.mxu0 0.0
      %1306 = vmatpush1.msra.mxu0 %v1284
      %1307 = vmatprep.subr.mxu0 0.0
      %1308 = vmatpush1.msra.mxu0 %v1285
      %1309 = vmatprep.subr.mxu0 0.0
      %1310 = vmatpush1.msra.mxu0 %v1286
      %1311 = vmatprep.subr.mxu0 0.0
      %1312 = vmatpush1.msra.mxu0 %v1287
      %1313 = vmatprep.subr.mxu0 0.0
      %1314 = vmatpush1.msra.mxu0 %v1288
      %1315 = vmatprep.subr.mxu0 0.0
      %1316 = vmatpush1.msra.mxu0 %v1289
      %1317 = vmatprep.subr.mxu0 0.0
      %1318 = vmatpush1.msra.mxu0 0.0
      %1319 = vmatprep.subr.mxu0 0.0
      %1320 = vmatpush1.msra.mxu0 0.0
      %1321 = vmatprep.subr.mxu0 0.0
      %1322 = vmatpush1.msra.mxu0 0.0
      %1323 = vmatprep.subr.mxu0 0.0
      %1324 = vmatpush1.msra.mxu0 0.0
      %1325 = vmatprep.subr.mxu0 0.0
      %1326 = vmatpush1.msra.mxu0 0.0
      %1327 = vmatprep.subr.mxu0 0.0
      %1328 = vmatpush1.msra.mxu0 0.0
      %1329 = vmatprep.subr.mxu0 0.0
      %1330 = vmatpush1.msra.mxu0 0.0
      %1331 = vmatprep.subr.mxu0 0.0
      %1332 = vmatpush1.msra.mxu0 0.0
      %1333 = vmatprep.subr.mxu0 0.0
      %1334 = vmatpush1.msra.mxu0 0.0
      %1335 = vmatprep.subr.mxu0 0.0
      %1336 = vmatpush1.msra.mxu0 0.0
      %1337 = vmatprep.subr.mxu0 0.0
      %1338 = vmatpush1.msra.mxu0 0.0
      %1339 = vmatprep.subr.mxu0 0.0
      %1340 = vmatpush1.msra.mxu0 0.0
      %1341 = vmatprep.subr.mxu0 0.0
      %1342 = vmatpush1.msra.mxu0 0.0
      %1343 = vmatprep.subr.mxu0 0.0
      %1344 = vmatpush1.msra.mxu0 0.0
      %1345 = vmatprep.subr.mxu0 0.0
      %1346 = vmatpush1.msra.mxu0 0.0
      %1347 = vmatprep.subr.mxu0 0.0
      %1348 = vmatpush1.msra.mxu0 0.0
      %1349 = vmatprep.subr.mxu0 0.0
      %1350 = vmatpush1.msra.mxu0 0.0
      %1351 = vmatprep.subr.mxu0 0.0
      %1352 = vmatpush1.msra.mxu0 0.0
      %1353 = vmatprep.subr.mxu0 0.0
      %1354 = vmatpush1.msra.mxu0 0.0
      %1355 = vmatprep.subr.mxu0 0.0
      %1356 = vmatpush1.msra.mxu0 0.0
      %1357 = vmatprep.mubr.f32.mxu0 0.0
      %1358 = vmatmul.mubr.f32.gmra.mrb[0].mxu0 %v1291
      %v1359 = vpop.f32.mrb[0].mxu0
      %v1360 = vadd.f32 0.0, %v1359
      %v1361 = vpop.f32.mrb[0].mxu0
      %1362 = vdwg.mxu0
      %v1363 = vadd.f32 %v1274, %v1360
      %v1364 = vadd.f32 %v1363, %v551
      %v1365 = vmax.f32 %v1364, 0.0
      %1367 = vrot.lane.b32.xlu0 %v1365, 64
      %v1368 = vpop.permute.xlu0 %1367
      %vm1370 = vcmask 780800
      %1371 = vst.msk [vmem:[#allocation3] sm:$0x7] %vm1370, %v1368
      %v1372 = vld [vmem:[#allocation3] sm:$0x7]
      %v1373 = vld [vmem:[%s5] sm:$0xff]
      %v1374 = vld [vmem:[%s5 + $0x8] sm:$0xff]
      %v1375 = vld [vmem:[%s5 + $0x10] sm:$0xff]
      %v1376 = vld [vmem:[%s5 + $0x18] sm:$0xff]
      %v1377 = vld [vmem:[%s5 + $0x20] sm:$0xff]
      %v1378 = vld [vmem:[%s5 + $0x28] sm:$0xff]
      %v1379 = vld [vmem:[%s5 + $0x30] sm:$0xff]
      %v1380 = vld [vmem:[%s5 + $0x38] sm:$0xff]
      %v1381 = vld [vmem:[%s5 + $0x40] sm:$0xff]
      %v1382 = vld [vmem:[%s5 + $0x48] sm:$0xff]
      %v1383 = vld [vmem:[%s5 + $0x50] sm:$0xff]
      %v1384 = vld [vmem:[%s5 + $0x58] sm:$0xff]
      %v1385 = vld [vmem:[%s6] sm:$0x1]
      %v1387 = vlaneseq
      %v1388 = vshrl.u32 %v1387, 7
      %v1389 = vsub.s32 0, %v1388
      %v1390 = vrot.slane %v1385, %v1389
      %v1393 = vsel %vm580, %v1372, 0
      %1395 = vmatprep.subr.mxu0 0.0
      %1396 = vmatpush1.msra.mxu0 %v1373
      %1397 = vmatprep.subr.mxu0 0.0
      %1398 = vmatpush1.msra.mxu0 %v1374
      %1399 = vmatprep.subr.mxu0 0.0
      %1400 = vmatpush1.msra.mxu0 %v1375
      %1401 = vmatprep.subr.mxu0 0.0
      %1402 = vmatpush1.msra.mxu0 %v1376
      %1403 = vmatprep.subr.mxu0 0.0
      %1404 = vmatpush1.msra.mxu0 %v1377
      %1405 = vmatprep.subr.mxu0 0.0
      %1406 = vmatpush1.msra.mxu0 %v1378
      %1407 = vmatprep.subr.mxu0 0.0
      %1408 = vmatpush1.msra.mxu0 %v1379
      %1409 = vmatprep.subr.mxu0 0.0
      %1410 = vmatpush1.msra.mxu0 %v1380
      %1411 = vmatprep.subr.mxu0 0.0
      %1412 = vmatpush1.msra.mxu0 %v1381
      %1413 = vmatprep.subr.mxu0 0.0
      %1414 = vmatpush1.msra.mxu0 %v1382
      %1415 = vmatprep.subr.mxu0 0.0
      %1416 = vmatpush1.msra.mxu0 %v1383
      %1417 = vmatprep.subr.mxu0 0.0
      %1418 = vmatpush1.msra.mxu0 %v1384
      %1419 = vmatprep.subr.mxu0 0.0
      %1420 = vmatpush1.msra.mxu0 0.0
      %1421 = vmatprep.subr.mxu0 0.0
      %1422 = vmatpush1.msra.mxu0 0.0
      %1423 = vmatprep.subr.mxu0 0.0
      %1424 = vmatpush1.msra.mxu0 0.0
      %1425 = vmatprep.subr.mxu0 0.0
      %1426 = vmatpush1.msra.mxu0 0.0
      %1427 = vmatprep.subr.mxu0 0.0
      %1428 = vmatpush1.msra.mxu0 0.0
      %1429 = vmatprep.subr.mxu0 0.0
      %1430 = vmatpush1.msra.mxu0 0.0
      %1431 = vmatprep.subr.mxu0 0.0
      %1432 = vmatpush1.msra.mxu0 0.0
      %1433 = vmatprep.subr.mxu0 0.0
      %1434 = vmatpush1.msra.mxu0 0.0
      %1435 = vmatprep.subr.mxu0 0.0
      %1436 = vmatpush1.msra.mxu0 0.0
      %1437 = vmatprep.subr.mxu0 0.0
      %1438 = vmatpush1.msra.mxu0 0.0
      %1439 = vmatprep.subr.mxu0 0.0
      %1440 = vmatpush1.msra.mxu0 0.0
      %1441 = vmatprep.subr.mxu0 0.0
      %1442 = vmatpush1.msra.mxu0 0.0
      %1443 = vmatprep.subr.mxu0 0.0
      %1444 = vmatpush1.msra.mxu0 0.0
      %1445 = vmatprep.subr.mxu0 0.0
      %1446 = vmatpush1.msra.mxu0 0.0
      %1447 = vmatprep.subr.mxu0 0.0
      %1448 = vmatpush1.msra.mxu0 0.0
      %1449 = vmatprep.subr.mxu0 0.0
      %1450 = vmatpush1.msra.mxu0 0.0
      %1451 = vmatprep.subr.mxu0 0.0
      %1452 = vmatpush1.msra.mxu0 0.0
      %1453 = vmatprep.subr.mxu0 0.0
      %1454 = vmatpush1.msra.mxu0 0.0
      %1455 = vmatprep.subr.mxu0 0.0
      %1456 = vmatpush1.msra.mxu0 0.0
      %1457 = vmatprep.subr.mxu0 0.0
      %1458 = vmatpush1.msra.mxu0 0.0
      %1459 = vmatprep.mubr.f32.mxu0 0.0
      %1460 = vmatmul.mubr.f32.gmra.mrb[0].mxu0 %v1393
      %v1461 = vpop.f32.mrb[0].mxu0
      %v1462 = vadd.f32 %v1390, %v1461
      %v1463 = vpop.f32.mrb[0].mxu0
      %1464 = vdwg.mxu0
      %v1465 = vld [vmem:[%s330] sm:$0x7]
      %v1466 = vadd.f32 %v1462, %v1465
      %1467 = vst.msk [vmem:[%s337] sm:$0x7] %vm817, %v1466
      %p1468 = scmp.lt.s32.totalorder %s23, 1
      %s1469 = scalar_select %p1468, %s23, 1
      %p1470 = scmp.lt.s32.totalorder %s24, 0
      %s1471 = scalar_select %p1470, %s24, 0
      %s1472 = sadd.s32 %s1471, %s1469
      %s1473 = smul.addr %s1472, 4
      %s1474 = scalar_lea.vmem %s8, %s1473
      // Predicated region
      $region53: #{tpu_custom_call.1} parent=51 // pred_check
        %p1475 = pneg %p229
      $region54: #{tpu_custom_call.1} parent=51 // pred_check_branch
        %1477 = sbr.rel (%p1475) target = $region56
      $region55: #{tpu_custom_call.1} parent=51 // pred_region
        _
      $region56: #{tpu_custom_call.1} parent=51 // pred_fallthru
        _
    $region52: #{tpu_custom_call.1} parent=5 // pred_fallthru
      _
    %p1478 = scmp.le.s32.totalorder 2, %s14
    // Predicated region
    $region57: #{tpu_custom_call.1} parent=5 // pred_check
      %p1479 = pneg %p1478
    $region58: #{tpu_custom_call.1} parent=5 // pred_check_branch
      %1481 = sbr.rel (%p1479) target = $region60
    $region59: #{tpu_custom_call.1} parent=5 // pred_region
      %s1482 = ssub.s32 %s14, 2
      // Predicated region
      $region61: #{tpu_custom_call.1} parent=59 // pred_check
        %p1483 = pneg %p235
      $region62: #{tpu_custom_call.1} parent=59 // pred_check_branch
        %1485 = sbr.rel (%p1483) target = $region64
      $region63: #{tpu_custom_call.1} parent=59 // pred_region
        %p1486 = scmp.lt.s32.totalorder %s25, 1
        %s1487 = scalar_select %p1486, %s25, 1
        %p1488 = scmp.lt.s32.totalorder %s26, 0
        %s1489 = scalar_select %p1488, %s26, 0
        %s1490 = sadd.s32 %s1489, %s1487
        %s1491 = smul.addr %s1490, 4
        %s1492 = scalar_lea.vmem %s8, %s1491
      $region64: #{tpu_custom_call.1} parent=59 // pred_fallthru
        _
    $region60: #{tpu_custom_call.1} parent=5 // pred_fallthru
      _
  $region6: #{tpu_custom_call.1} parent=0 // loop_footer
    %s18 = sadd.s32 1, %s14
  $region7: #{tpu_custom_call.1} parent=0 // loop_footer_branch
    %13 = sbr.rel target = $region3
  $region8: #{tpu_custom_call.1} parent=0 // loop_exit
    _

</llo_original>
